<compile_context>
chip_gen: v5e
topology: v5e:2x2
jax: 0.10.0
libtpu: 0.0.40
codegen_flags: <defaults>
</compile_context>

<pallas_src>
import math
import numpy as np
import jax
import jax.numpy as jnp
from jax.experimental import pallas as pl
from jax.experimental.pallas import tpu as pltpu


def _round_up(v, m):
    return ((v + m - 1) // m) * m


# --------------------------------------------------------------------------
# FFT_for_Period (FFT / top-k stay in plain JAX; the selected periods go to
# the host exactly like the PyTorch .detach().cpu().numpy() — they define
# static conv geometry for the kernel).
# --------------------------------------------------------------------------
def fft_for_period(x, k):
    # TODO(synk): bucketizing periods to a fixed static set would avoid the
    # host sync and per-period recompiles, but changes the module's semantics.
    xf = jnp.fft.rfft(x, axis=1)
    amp = jnp.abs(xf)                              # (B, F, N)
    freq = amp.mean(axis=0).mean(axis=-1)          # (F,)
    freq = freq.at[0].set(0.0)
    _, top = jax.lax.top_k(freq, k)
    top_np = np.asarray(jax.device_get(top))
    # Guard: if the (zeroed) DC bin sneaks into top-k (degenerate spectra),
    # avoid the T // 0 division the PyTorch code would crash on.
    top_np = np.maximum(top_np, 1)
    period = x.shape[1] // top_np                  # host-side ints
    period_weight = amp.mean(axis=-1)[:, top_np]   # (B, k)
    return period, period_weight


# --------------------------------------------------------------------------
# Fused kernel: all K period branches for one (Bt, T, N) batch block.
# For period W the zero-padded sequence is viewed as an (H=L//W, W) grid with
# N channels; in flat time index l the 3x3 depthwise taps are reads at
# l + di*W + dj with a zero halo, and the column wrap (dj = +-1 crossing a
# period boundary) is masked with the position-within-period index.  The
# pointwise conv is a (Bt*T, N) x (N, N) MXU matmul.
# --------------------------------------------------------------------------
def _make_fused_kernel(periods, T, N, K, Bt, pad_left, scr_rows):
    periods = [int(w) for w in periods]
    bot_rows = scr_rows - pad_left - T

    def kernel(x_ref, wts_ref, wdw_ref, bdw_ref, wpw_ref, bpw_ref,
               o_ref, xpad_ref):
        # ---- stage x into the zero-haloed flat-time scratch ----------------
        # Only the halo rows are zeroed; the T valid rows are written once.
        x = x_ref[...].astype(jnp.float32)                       # (Bt, T, N)
        xpad_ref[:, pl.ds(0, pad_left), :] = jnp.zeros(
            (Bt, pad_left, N), jnp.float32)
        xpad_ref[:, pl.ds(pad_left + T, bot_rows), :] = jnp.zeros(
            (Bt, bot_rows, N), jnp.float32)
        xpad_ref[:, pl.ds(pad_left, T), :] = x

        o_ref[...] = x                                           # residual seed

        w_dw = wdw_ref[...]                                      # (9, N)  f32
        b_dw = bdw_ref[...]                                      # (1, N)  f32
        b_pw = bpw_ref[...]                                      # (1, N)  f32
        w_pw = wpw_ref[...]                                      # (N, N)  bf16
        wts = wts_ref[...]                                       # (Bt, T, K) f32
        t_idx = jax.lax.broadcasted_iota(jnp.int32, (1, T, 1), 1)

        for i, W in enumerate(periods):
            # Column-wrap masks, hoisted out of the tap loop (shared by all ki).
            col = t_idx % W
            left_ok = col >= 1                                   # dj = -1 valid
            right_ok = col <= W - 2                              # dj = +1 valid

            # Depthwise 3x3, stride 1, zero padding — f32 VPU math.
            # TODO(synk): pltpu.roll-based +-1 shifts (XLU) could cut the 9
            # loads to 3 once the boundary-row patch is validated.
            acc = jnp.zeros((Bt, T, N), jnp.float32)
            for ki in range(3):                                  # di = ki - 1
                base = pad_left + (ki - 1) * W
                v_m = xpad_ref[:, pl.ds(base - 1, T), :]         # dj = -1
                v_0 = xpad_ref[:, pl.ds(base, T), :]             # dj =  0
                v_p = xpad_ref[:, pl.ds(base + 1, T), :]         # dj = +1
                acc = acc + jnp.where(left_ok, v_m, 0.0) * w_dw[3 * ki + 0]
                acc = acc + v_0 * w_dw[3 * ki + 1]
                acc = acc + jnp.where(right_ok, v_p, 0.0) * w_dw[3 * ki + 2]
            acc = jnp.maximum(acc + b_dw, 0.0)                   # depthwise ReLU

            # Pointwise 1x1 conv on the MXU: fold batch rows into M = Bt*T so
            # the systolic array is filled; bf16 operands, f32 accumulation.
            if T % 8 == 0:        # (Bt,T,N)->(Bt*T,N) fold is layout-trivial
                y = jnp.dot(acc.reshape(Bt * T, N).astype(jnp.bfloat16), w_pw,
                            preferred_element_type=jnp.float32)
                y = jnp.maximum(y + b_pw, 0.0).reshape(Bt, T, N)
            else:                 # keep layout trivial for odd T
                y = jnp.stack(
                    [jnp.maximum(
                        jnp.dot(acc[lb].astype(jnp.bfloat16), w_pw,
                                preferred_element_type=jnp.float32) + b_pw,
                        0.0) for lb in range(Bt)], axis=0)

            # Weighted residual accumulation; the accumulator stays in the
            # output VMEM block and is written back to HBM once per step.
            o_ref[...] = o_ref[...] + wts[:, :, i:i + 1] * y

    return kernel


def _choose_block_batch(B, T, N, K, scr_rows):
    """Pick the batch block size Bt (grid = B // Bt)."""
    # VMEM per batch row: x + out blocks (double-buffered), weight rows, scratch.
    bytes_per_sample = 4 * T * N * 4 + scr_rows * N * 4 + 2 * T * K * 4
    budget = 20 << 20                              # stay well under v7x 64 MiB
    bt_cap = max(1, budget // max(1, bytes_per_sample))
    target_rows = 256                              # MXU M-dim fill (v6e/v7x)
    bt = max(1, min(B, bt_cap, -(-target_rows // T)))
    while bt > 1 and B % bt != 0:                  # keep blocks exact
        bt -= 1
    # v7x has 2 TensorCores: prefer >= 2 parallel grid steps when that does
    # not drop the matmul M dimension below ~128 rows.
    if B // bt < 2 and bt > 1 and (bt // 2) * T >= 128 and B % (bt // 2) == 0:
        bt //= 2
    return bt


def _times_fused(x, wts_btk, params, periods):
    """One fused pallas_call covering all K period branches."""
    B, T, N = x.shape
    K = len(periods)
    w_max = max(int(w) for w in periods)
    pad_left = _round_up(w_max + 1, 8)                 # 8-aligned left halo
    scr_rows = _round_up(pad_left + T + w_max + 1, 8)  # flat scratch length
    Bt = _choose_block_batch(B, T, N, K, scr_rows)
    w_dw, b_dw, w_pw, b_pw = params

    kernel = _make_fused_kernel(periods, T, N, K, Bt, pad_left, scr_rows)

    vmem_bytes = (4 * Bt * T * N * 4            # x + out blocks, double-buffered
                  + 2 * Bt * T * K * 4          # per-row softmax weights
                  + Bt * scr_rows * N * 4       # flat-time scratch
                  + N * N * 2 + 11 * N * 4)     # conv parameters
    vmem_limit = int(min(64 << 20, max(32 << 20, 2 * vmem_bytes)))

    return pl.pallas_call(
        kernel,
        out_shape=jax.ShapeDtypeStruct((B, T, N), jnp.float32),
        grid=(B // Bt,),
        in_specs=[
            pl.BlockSpec((Bt, T, N), lambda b: (b, 0, 0)),   # x
            pl.BlockSpec((Bt, T, K), lambda b: (b, 0, 0)),   # softmax weights
            pl.BlockSpec((9, N), lambda b: (0, 0)),          # depthwise weight
            pl.BlockSpec((1, N), lambda b: (0, 0)),          # depthwise bias
            pl.BlockSpec((N, N), lambda b: (0, 0)),          # pointwise weight (bf16)
            pl.BlockSpec((1, N), lambda b: (0, 0)),          # pointwise bias
        ],
        out_specs=pl.BlockSpec((Bt, T, N), lambda b: (b, 0, 0)),
        scratch_shapes=[pltpu.VMEM((Bt, scr_rows, N), jnp.float32)],
        compiler_params=pltpu.CompilerParams(
            dimension_semantics=("parallel",),
            vmem_limit_bytes=vmem_limit),
    )(x, wts_btk, w_dw, b_dw, w_pw, b_pw)


# --------------------------------------------------------------------------
# Module wrapper
# --------------------------------------------------------------------------
class TimesPallas:
    """Pallas version of `Times`.

    # TODO(synk): MobileNetV1_LABAY's exact definition is not in the source;
    # the conv is one canonical MobileNetV1 depthwise-separable unit
    # (3x3 depthwise + ReLU, 1x1 pointwise + ReLU), d_model -> d_model,
    # spatial preserving (stride 1, padding 1).
    """

    def __init__(self, seq_len, out_len, top_k, d_model, d_ff, num_kernels, key):
        self.seq_len = seq_len
        self.out_len = out_len
        self.k = top_k
        self.d_model = d_model
        C = d_model
        k1, k2, k3, k4 = jax.random.split(key, 4)
        self.params = (
            jax.random.normal(k1, (9, C), jnp.float32) * (1.0 / 3.0),     # dw weight (3x3 flat)
            jax.random.normal(k2, (1, C), jnp.float32) * 0.1,             # dw bias
            (jax.random.normal(k3, (C, C), jnp.float32) / math.sqrt(C)
             ).astype(jnp.bfloat16),                                      # pw weight (bf16 for MXU)
            jax.random.normal(k4, (1, C), jnp.float32) * 0.1,             # pw bias
        )

    def __call__(self, x):
        B, T, N = x.shape
        total = self.seq_len + self.out_len
        assert T == total and N == self.d_model
        period_list, period_weight = fft_for_period(x, self.k)
        wts = jax.nn.softmax(period_weight, axis=1).astype(jnp.float32)   # (B, K)
        # Per-time-row copy of the per-sample weights so the in-kernel branch
        # scaling is a plain lane-broadcast (tiny: B*T*K floats).
        wts_btk = jnp.broadcast_to(wts[:, None, :], (B, T, self.k))
        periods = [int(p) for p in np.asarray(period_list)]
        return _times_fused(x, wts_btk, self.params, periods)


# --------------------------------------------------------------------------
# Pure-JAX reference (same math, same bf16 rounding for the MXU matmul).
# --------------------------------------------------------------------------
def _reference(x, params, seq_len, out_len, k):
    w_dw, b_dw, w_pw, b_pw = params
    B, T, N = x.shape
    total = seq_len + out_len
    period_list, period_weight = fft_for_period(x, k)
    wts = jax.nn.softmax(period_weight, axis=1).astype(jnp.float32)
    w_pw_f32 = w_pw.astype(jnp.float32)
    out_total = x.astype(jnp.float32)
    for i in range(k):
        period = int(period_list[i])
        H = -(-total // period)
        L = H * period
        xt = x
        if L > total:
            xt = jnp.concatenate(
                [x, jnp.zeros((B, L - total, N), x.dtype)], axis=1)
        g = xt.reshape(B, H, period, N)
        gp = jnp.pad(g, ((0, 0), (1, 1), (1, 1), (0, 0)))
        acc = jnp.zeros((B, H, period, N), jnp.float32)
        for ki in range(3):
            for kj in range(3):
                acc = acc + gp[:, ki:ki + H, kj:kj + period, :] * w_dw[3 * ki + kj]
        acc = jnp.maximum(acc + b_dw[0], 0.0)
        a_bf = acc.astype(jnp.bfloat16).astype(jnp.float32)
        y = jnp.einsum('bhwc,cd->bhwd', a_bf, w_pw_f32,
                       precision=jax.lax.Precision.HIGHEST)
        y = jnp.maximum(y + b_pw[0], 0.0)
        y = y.reshape(B, L, N)[:, :total, :]
        out_total = out_total + wts[:, i][:, None, None] * y
    return out_total


if __name__ == "__main__":
    # Small shapes consistent with the module: x is (B, T=seq_len+out_len, N=d_model).
    # d_model = 128 keeps the lane axis dense.
    B, seq_len, out_len, top_k, d_model = 2, 24, 8, 3, 128
    T = seq_len + out_len

    x = jax.random.normal(jax.random.PRNGKey(0), (B, T, d_model), jnp.float32)
    model = TimesPallas(seq_len, out_len, top_k, d_model,
                        d_ff=256, num_kernels=2, key=jax.random.PRNGKey(42))

    y = jax.block_until_ready(model(x))
    assert y.shape == (B, T, d_model)
    assert bool(jnp.all(jnp.isfinite(y)))

    y_ref = jax.block_until_ready(
        _reference(x, model.params, seq_len, out_len, top_k))
    np.testing.assert_allclose(np.asarray(y), np.asarray(y_ref),
                               rtol=1e-2, atol=1e-2)

    print("KERNEL_OK")
</pallas_src>

<mosaic_0001>
module attributes {stable_mosaic.version = 11 : i64} {
  func.func @kernel(%arg0: i32, %arg1: memref<2x32x128xf32, #tpu.memory_space<vmem>>, %arg2: memref<2x32x3xf32, #tpu.memory_space<vmem>>, %arg3: memref<9x128xf32, #tpu.memory_space<vmem>>, %arg4: memref<1x128xf32, #tpu.memory_space<vmem>>, %arg5: memref<128x128xbf16, #tpu.memory_space<vmem>>, %arg6: memref<1x128xf32, #tpu.memory_space<vmem>>, %arg7: memref<2x32x128xf32, #tpu.memory_space<vmem>>, %arg8: memref<2x64x128xf32, #tpu.memory_space<vmem>>) attributes {dimension_semantics = [#tpu.dimension_semantics<parallel>], iteration_bounds = array<i64: 1>, scalar_prefetch = 0 : i64, scratch_operands = 1 : i64, tpu.core_type = #tpu.core_type<tc>, window_params = [{transform_indices = @transform_0, window_bounds = array<i64: 2, 32, 128>}, {transform_indices = @transform_1, window_bounds = array<i64: 2, 32, 3>}, {pipeline_mode = #tpu.pipeline_mode<synchronous>, transform_indices = @transform_2, window_bounds = array<i64: 9, 128>}, {pipeline_mode = #tpu.pipeline_mode<synchronous>, transform_indices = @transform_3, window_bounds = array<i64: 1, 128>}, {pipeline_mode = #tpu.pipeline_mode<synchronous>, transform_indices = @transform_4, window_bounds = array<i64: 128, 128>}, {pipeline_mode = #tpu.pipeline_mode<synchronous>, transform_indices = @transform_5, window_bounds = array<i64: 1, 128>}, {transform_indices = @transform_6, window_bounds = array<i64: 2, 32, 128>}]} {
    %c0 = arith.constant 0 : index
    %c0_0 = arith.constant 0 : index
    %c0_1 = arith.constant 0 : index
    %0 = vector.load %arg1[%c0, %c0_0, %c0_1] : memref<2x32x128xf32, #tpu.memory_space<vmem>>, vector<2x32x128xf32>
    %cst = arith.constant 0.000000e+00 : f32
    %1 = vector.broadcast %cst : f32 to vector<2x16x128xf32>
    %c0_2 = arith.constant 0 : index
    %c0_3 = arith.constant 0 : index
    %c0_4 = arith.constant 0 : index
    %2 = vector.load %arg8[%c0_2, %c0_3, %c0_4] : memref<2x64x128xf32, #tpu.memory_space<vmem>>, vector<2x16x128xf32>
    tpu.vector_store %arg8[%c0_2, %c0_3, %c0_4], %1 {strides = array<i32>} : memref<2x64x128xf32, #tpu.memory_space<vmem>>, vector<2x16x128xf32>,
    %cst_5 = arith.constant 0.000000e+00 : f32
    %3 = vector.broadcast %cst_5 : f32 to vector<2x16x128xf32>
    %c0_6 = arith.constant 0 : index
    %c48 = arith.constant 48 : index
    %c0_7 = arith.constant 0 : index
    %4 = vector.load %arg8[%c0_6, %c48, %c0_7] : memref<2x64x128xf32, #tpu.memory_space<vmem>>, vector<2x16x128xf32>
    tpu.vector_store %arg8[%c0_6, %c48, %c0_7], %3 {strides = array<i32>} : memref<2x64x128xf32, #tpu.memory_space<vmem>>, vector<2x16x128xf32>,
    %c0_8 = arith.constant 0 : index
    %c16 = arith.constant 16 : index
    %c0_9 = arith.constant 0 : index
    %5 = vector.load %arg8[%c0_8, %c16, %c0_9] : memref<2x64x128xf32, #tpu.memory_space<vmem>>, vector<2x32x128xf32>
    tpu.vector_store %arg8[%c0_8, %c16, %c0_9], %0 {strides = array<i32>} : memref<2x64x128xf32, #tpu.memory_space<vmem>>, vector<2x32x128xf32>,
    %c0_10 = arith.constant 0 : index
    %c0_11 = arith.constant 0 : index
    %c0_12 = arith.constant 0 : index
    %6 = vector.load %arg7[%c0_10, %c0_11, %c0_12] : memref<2x32x128xf32, #tpu.memory_space<vmem>>, vector<2x32x128xf32>
    tpu.vector_store %arg7[%c0_10, %c0_11, %c0_12], %0 {strides = array<i32>} : memref<2x32x128xf32, #tpu.memory_space<vmem>>, vector<2x32x128xf32>,
    %c0_13 = arith.constant 0 : index
    %c0_14 = arith.constant 0 : index
    %7 = vector.load %arg3[%c0_13, %c0_14] : memref<9x128xf32, #tpu.memory_space<vmem>>, vector<9x128xf32>
    %c0_15 = arith.constant 0 : index
    %c0_16 = arith.constant 0 : index
    %8 = vector.load %arg4[%c0_15, %c0_16] : memref<1x128xf32, #tpu.memory_space<vmem>>, vector<1x128xf32>
    %c0_17 = arith.constant 0 : index
    %c0_18 = arith.constant 0 : index
    %9 = vector.load %arg6[%c0_17, %c0_18] : memref<1x128xf32, #tpu.memory_space<vmem>>, vector<1x128xf32>
    %c0_19 = arith.constant 0 : index
    %c0_20 = arith.constant 0 : index
    %10 = vector.load %arg5[%c0_19, %c0_20] : memref<128x128xbf16, #tpu.memory_space<vmem>>, vector<128x128xbf16>
    %c0_21 = arith.constant 0 : index
    %c0_22 = arith.constant 0 : index
    %c0_23 = arith.constant 0 : index
    %11 = vector.load %arg2[%c0_21, %c0_22, %c0_23] : memref<2x32x3xf32, #tpu.memory_space<vmem>>, vector<2x32x3xf32>
    %12 = tpu.iota {dimensions = array<i32: 1>} : vector<1x32x1xi32>
    %c10_i32 = arith.constant 10 : i32
    %c0_i32 = arith.constant 0 : i32
    %13 = arith.cmpi eq, %c10_i32, %c0_i32 : i32
    %c1_i32 = arith.constant 1 : i32
    %14 = arith.select %13, %c1_i32, %c10_i32 : i32
    %15 = vector.broadcast %14 : i32 to vector<1x32x1xi32>
    %16 = arith.remsi %12, %15 : vector<1x32x1xi32>
    %c0_i32_24 = arith.constant 0 : i32
    %17 = vector.broadcast %c0_i32_24 : i32 to vector<1x32x1xi32>
    %18 = arith.cmpi ne, %16, %17 : vector<1x32x1xi32>
    %c0_i32_25 = arith.constant 0 : i32
    %19 = vector.broadcast %c0_i32_25 : i32 to vector<1x32x1xi32>
    %20 = arith.cmpi slt, %16, %19 : vector<1x32x1xi32>
    %c0_i32_26 = arith.constant 0 : i32
    %21 = arith.cmpi slt, %14, %c0_i32_26 : i32
    %22 = vector.broadcast %21 : i1 to vector<1x32x1xi1>
    %23 = vector.broadcast %22 : vector<1x32x1xi1> to vector<1x32x1xi1>
    %24 = arith.xori %20, %23 : vector<1x32x1xi1>
    %25 = arith.andi %24, %18 : vector<1x32x1xi1>
    %26 = vector.broadcast %14 : i32 to vector<1x32x1xi32>
    %27 = arith.addi %16, %26 : vector<1x32x1xi32>
    %28 = arith.select %25, %27, %16 : vector<1x32x1xi1>, vector<1x32x1xi32>
    %c1_i32_27 = arith.constant 1 : i32
    %29 = vector.broadcast %c1_i32_27 : i32 to vector<1x32x1xi32>
    %30 = arith.cmpi sge, %28, %29 : vector<1x32x1xi32>
    %c8_i32 = arith.constant 8 : i32
    %31 = vector.broadcast %c8_i32 : i32 to vector<1x32x1xi32>
    %32 = arith.cmpi sle, %28, %31 : vector<1x32x1xi32>
    %cst_28 = arith.constant 0.000000e+00 : f32
    %33 = vector.broadcast %cst_28 : f32 to vector<2x32x128xf32>
    %c0_29 = arith.constant 0 : index
    %c5 = arith.constant 5 : index
    %c0_30 = arith.constant 0 : index
    %34 = vector.load %arg8[%c0_29, %c5, %c0_30] : memref<2x64x128xf32, #tpu.memory_space<vmem>>, vector<2x32x128xf32>
    %c0_31 = arith.constant 0 : index
    %c6 = arith.constant 6 : index
    %c0_32 = arith.constant 0 : index
    %35 = vector.load %arg8[%c0_31, %c6, %c0_32] : memref<2x64x128xf32, #tpu.memory_space<vmem>>, vector<2x32x128xf32>
    %c0_33 = arith.constant 0 : index
    %c7 = arith.constant 7 : index
    %c0_34 = arith.constant 0 : index
    %36 = vector.load %arg8[%c0_33, %c7, %c0_34] : memref<2x64x128xf32, #tpu.memory_space<vmem>>, vector<2x32x128xf32>
    %cst_35 = arith.constant 0.000000e+00 : f32
    %37 = vector.shape_cast %30 : vector<1x32x1xi1> to vector<1x32x1xi1>
    %38 = vector.broadcast %37 : vector<1x32x1xi1> to vector<2x32x128xi1>
    %39 = vector.broadcast %cst_35 : f32 to vector<2x32x128xf32>
    %40 = arith.select %38, %34, %39 : vector<2x32x128xi1>, vector<2x32x128xf32>
    %41 = vector.extract_strided_slice %7 {offsets = [0, 0], sizes = [1, 128], strides = [1, 1]} : vector<9x128xf32> to vector<1x128xf32>
    %42 = vector.shape_cast %41 : vector<1x128xf32> to vector<128xf32>
    %43 = vector.shape_cast %42 : vector<128xf32> to vector<1x1x128xf32>
    %44 = vector.broadcast %43 : vector<1x1x128xf32> to vector<2x32x128xf32>
    %45 = arith.mulf %40, %44 : vector<2x32x128xf32>
    %46 = arith.addf %33, %45 : vector<2x32x128xf32>
    %47 = vector.extract_strided_slice %7 {offsets = [1, 0], sizes = [1, 128], strides = [1, 1]} : vector<9x128xf32> to vector<1x128xf32>
    %48 = vector.shape_cast %47 : vector<1x128xf32> to vector<128xf32>
    %49 = vector.shape_cast %48 : vector<128xf32> to vector<1x1x128xf32>
    %50 = vector.broadcast %49 : vector<1x1x128xf32> to vector<2x32x128xf32>
    %51 = arith.mulf %35, %50 : vector<2x32x128xf32>
    %52 = arith.addf %46, %51 : vector<2x32x128xf32>
    %cst_36 = arith.constant 0.000000e+00 : f32
    %53 = vector.shape_cast %32 : vector<1x32x1xi1> to vector<1x32x1xi1>
    %54 = vector.broadcast %53 : vector<1x32x1xi1> to vector<2x32x128xi1>
    %55 = vector.broadcast %cst_36 : f32 to vector<2x32x128xf32>
    %56 = arith.select %54, %36, %55 : vector<2x32x128xi1>, vector<2x32x128xf32>
    %57 = vector.extract_strided_slice %7 {offsets = [2, 0], sizes = [1, 128], strides = [1, 1]} : vector<9x128xf32> to vector<1x128xf32>
    %58 = vector.shape_cast %57 : vector<1x128xf32> to vector<128xf32>
    %59 = vector.shape_cast %58 : vector<128xf32> to vector<1x1x128xf32>
    %60 = vector.broadcast %59 : vector<1x1x128xf32> to vector<2x32x128xf32>
    %61 = arith.mulf %56, %60 : vector<2x32x128xf32>
    %62 = arith.addf %52, %61 : vector<2x32x128xf32>
    %c0_37 = arith.constant 0 : index
    %c15 = arith.constant 15 : index
    %c0_38 = arith.constant 0 : index
    %63 = vector.load %arg8[%c0_37, %c15, %c0_38] : memref<2x64x128xf32, #tpu.memory_space<vmem>>, vector<2x32x128xf32>
    %c0_39 = arith.constant 0 : index
    %c16_40 = arith.constant 16 : index
    %c0_41 = arith.constant 0 : index
    %64 = vector.load %arg8[%c0_39, %c16_40, %c0_41] : memref<2x64x128xf32, #tpu.memory_space<vmem>>, vector<2x32x128xf32>
    %c0_42 = arith.constant 0 : index
    %c17 = arith.constant 17 : index
    %c0_43 = arith.constant 0 : index
    %65 = vector.load %arg8[%c0_42, %c17, %c0_43] : memref<2x64x128xf32, #tpu.memory_space<vmem>>, vector<2x32x128xf32>
    %cst_44 = arith.constant 0.000000e+00 : f32
    %66 = vector.shape_cast %30 : vector<1x32x1xi1> to vector<1x32x1xi1>
    %67 = vector.broadcast %66 : vector<1x32x1xi1> to vector<2x32x128xi1>
    %68 = vector.broadcast %cst_44 : f32 to vector<2x32x128xf32>
    %69 = arith.select %67, %63, %68 : vector<2x32x128xi1>, vector<2x32x128xf32>
    %70 = vector.extract_strided_slice %7 {offsets = [3, 0], sizes = [1, 128], strides = [1, 1]} : vector<9x128xf32> to vector<1x128xf32>
    %71 = vector.shape_cast %70 : vector<1x128xf32> to vector<128xf32>
    %72 = vector.shape_cast %71 : vector<128xf32> to vector<1x1x128xf32>
    %73 = vector.broadcast %72 : vector<1x1x128xf32> to vector<2x32x128xf32>
    %74 = arith.mulf %69, %73 : vector<2x32x128xf32>
    %75 = arith.addf %62, %74 : vector<2x32x128xf32>
    %76 = vector.extract_strided_slice %7 {offsets = [4, 0], sizes = [1, 128], strides = [1, 1]} : vector<9x128xf32> to vector<1x128xf32>
    %77 = vector.shape_cast %76 : vector<1x128xf32> to vector<128xf32>
    %78 = vector.shape_cast %77 : vector<128xf32> to vector<1x1x128xf32>
    %79 = vector.broadcast %78 : vector<1x1x128xf32> to vector<2x32x128xf32>
    %80 = arith.mulf %64, %79 : vector<2x32x128xf32>
    %81 = arith.addf %75, %80 : vector<2x32x128xf32>
    %cst_45 = arith.constant 0.000000e+00 : f32
    %82 = vector.shape_cast %32 : vector<1x32x1xi1> to vector<1x32x1xi1>
    %83 = vector.broadcast %82 : vector<1x32x1xi1> to vector<2x32x128xi1>
    %84 = vector.broadcast %cst_45 : f32 to vector<2x32x128xf32>
    %85 = arith.select %83, %65, %84 : vector<2x32x128xi1>, vector<2x32x128xf32>
    %86 = vector.extract_strided_slice %7 {offsets = [5, 0], sizes = [1, 128], strides = [1, 1]} : vector<9x128xf32> to vector<1x128xf32>
    %87 = vector.shape_cast %86 : vector<1x128xf32> to vector<128xf32>
    %88 = vector.shape_cast %87 : vector<128xf32> to vector<1x1x128xf32>
    %89 = vector.broadcast %88 : vector<1x1x128xf32> to vector<2x32x128xf32>
    %90 = arith.mulf %85, %89 : vector<2x32x128xf32>
    %91 = arith.addf %81, %90 : vector<2x32x128xf32>
    %c0_46 = arith.constant 0 : index
    %c25 = arith.constant 25 : index
    %c0_47 = arith.constant 0 : index
    %92 = vector.load %arg8[%c0_46, %c25, %c0_47] : memref<2x64x128xf32, #tpu.memory_space<vmem>>, vector<2x32x128xf32>
    %c0_48 = arith.constant 0 : index
    %c26 = arith.constant 26 : index
    %c0_49 = arith.constant 0 : index
    %93 = vector.load %arg8[%c0_48, %c26, %c0_49] : memref<2x64x128xf32, #tpu.memory_space<vmem>>, vector<2x32x128xf32>
    %c0_50 = arith.constant 0 : index
    %c27 = arith.constant 27 : index
    %c0_51 = arith.constant 0 : index
    %94 = vector.load %arg8[%c0_50, %c27, %c0_51] : memref<2x64x128xf32, #tpu.memory_space<vmem>>, vector<2x32x128xf32>
    %cst_52 = arith.constant 0.000000e+00 : f32
    %95 = vector.shape_cast %30 : vector<1x32x1xi1> to vector<1x32x1xi1>
    %96 = vector.broadcast %95 : vector<1x32x1xi1> to vector<2x32x128xi1>
    %97 = vector.broadcast %cst_52 : f32 to vector<2x32x128xf32>
    %98 = arith.select %96, %92, %97 : vector<2x32x128xi1>, vector<2x32x128xf32>
    %99 = vector.extract_strided_slice %7 {offsets = [6, 0], sizes = [1, 128], strides = [1, 1]} : vector<9x128xf32> to vector<1x128xf32>
    %100 = vector.shape_cast %99 : vector<1x128xf32> to vector<128xf32>
    %101 = vector.shape_cast %100 : vector<128xf32> to vector<1x1x128xf32>
    %102 = vector.broadcast %101 : vector<1x1x128xf32> to vector<2x32x128xf32>
    %103 = arith.mulf %98, %102 : vector<2x32x128xf32>
    %104 = arith.addf %91, %103 : vector<2x32x128xf32>
    %105 = vector.extract_strided_slice %7 {offsets = [7, 0], sizes = [1, 128], strides = [1, 1]} : vector<9x128xf32> to vector<1x128xf32>
    %106 = vector.shape_cast %105 : vector<1x128xf32> to vector<128xf32>
    %107 = vector.shape_cast %106 : vector<128xf32> to vector<1x1x128xf32>
    %108 = vector.broadcast %107 : vector<1x1x128xf32> to vector<2x32x128xf32>
    %109 = arith.mulf %93, %108 : vector<2x32x128xf32>
    %110 = arith.addf %104, %109 : vector<2x32x128xf32>
    %cst_53 = arith.constant 0.000000e+00 : f32
    %111 = vector.shape_cast %32 : vector<1x32x1xi1> to vector<1x32x1xi1>
    %112 = vector.broadcast %111 : vector<1x32x1xi1> to vector<2x32x128xi1>
    %113 = vector.broadcast %cst_53 : f32 to vector<2x32x128xf32>
    %114 = arith.select %112, %94, %113 : vector<2x32x128xi1>, vector<2x32x128xf32>
    %115 = vector.extract_strided_slice %7 {offsets = [8, 0], sizes = [1, 128], strides = [1, 1]} : vector<9x128xf32> to vector<1x128xf32>
    %116 = vector.shape_cast %115 : vector<1x128xf32> to vector<128xf32>
    %117 = vector.shape_cast %116 : vector<128xf32> to vector<1x1x128xf32>
    %118 = vector.broadcast %117 : vector<1x1x128xf32> to vector<2x32x128xf32>
    %119 = arith.mulf %114, %118 : vector<2x32x128xf32>
    %120 = arith.addf %110, %119 : vector<2x32x128xf32>
    %121 = vector.shape_cast %8 : vector<1x128xf32> to vector<1x1x128xf32>
    %122 = vector.broadcast %121 : vector<1x1x128xf32> to vector<2x32x128xf32>
    %123 = arith.addf %120, %122 : vector<2x32x128xf32>
    %cst_54 = arith.constant 0.000000e+00 : f32
    %124 = vector.broadcast %cst_54 : f32 to vector<2x32x128xf32>
    %125 = arith.maximumf %123, %124 : vector<2x32x128xf32>
    %126 = vector.shape_cast %125 : vector<2x32x128xf32> to vector<64x128xf32>
    %127 = arith.truncf %126 : vector<64x128xf32> to vector<64x128xbf16>
    %cst_55 = arith.constant dense<0.000000e+00> : vector<64x128xf32>
    %128 = tpu.matmul %127, %10, %cst_55 {dimension_numbers = #tpu.dot_dimension_numbers<[1], [0], [0], [1], [0, 0, 1, 1], [], []>} : vector<64x128xbf16>, vector<128x128xbf16>, vector<64x128xf32> -> vector<64x128xf32>
    %129 = vector.broadcast %9 : vector<1x128xf32> to vector<64x128xf32>
    %130 = arith.addf %128, %129 : vector<64x128xf32>
    %cst_56 = arith.constant 0.000000e+00 : f32
    %131 = vector.broadcast %cst_56 : f32 to vector<64x128xf32>
    %132 = arith.maximumf %130, %131 : vector<64x128xf32>
    %133 = vector.shape_cast %132 : vector<64x128xf32> to vector<2x32x128xf32>
    %c0_57 = arith.constant 0 : index
    %c0_58 = arith.constant 0 : index
    %c0_59 = arith.constant 0 : index
    %134 = vector.load %arg7[%c0_57, %c0_58, %c0_59] : memref<2x32x128xf32, #tpu.memory_space<vmem>>, vector<2x32x128xf32>
    %135 = vector.extract_strided_slice %11 {offsets = [0, 0, 0], sizes = [2, 32, 1], strides = [1, 1, 1]} : vector<2x32x3xf32> to vector<2x32x1xf32>
    %136 = vector.broadcast %135 : vector<2x32x1xf32> to vector<2x32x128xf32>
    %137 = arith.mulf %136, %133 : vector<2x32x128xf32>
    %138 = arith.addf %134, %137 : vector<2x32x128xf32>
    %c0_60 = arith.constant 0 : index
    %c0_61 = arith.constant 0 : index
    %c0_62 = arith.constant 0 : index
    %139 = vector.load %arg7[%c0_60, %c0_61, %c0_62] : memref<2x32x128xf32, #tpu.memory_space<vmem>>, vector<2x32x128xf32>
    tpu.vector_store %arg7[%c0_60, %c0_61, %c0_62], %138 {strides = array<i32>} : memref<2x32x128xf32, #tpu.memory_space<vmem>>, vector<2x32x128xf32>,
    %c2_i32 = arith.constant 2 : i32
    %c0_i32_63 = arith.constant 0 : i32
    %140 = arith.cmpi eq, %c2_i32, %c0_i32_63 : i32
    %c1_i32_64 = arith.constant 1 : i32
    %141 = arith.select %140, %c1_i32_64, %c2_i32 : i32
    %142 = vector.broadcast %141 : i32 to vector<1x32x1xi32>
    %143 = arith.remsi %12, %142 : vector<1x32x1xi32>
    %c0_i32_65 = arith.constant 0 : i32
    %144 = vector.broadcast %c0_i32_65 : i32 to vector<1x32x1xi32>
    %145 = arith.cmpi ne, %143, %144 : vector<1x32x1xi32>
    %c0_i32_66 = arith.constant 0 : i32
    %146 = vector.broadcast %c0_i32_66 : i32 to vector<1x32x1xi32>
    %147 = arith.cmpi slt, %143, %146 : vector<1x32x1xi32>
    %c0_i32_67 = arith.constant 0 : i32
    %148 = arith.cmpi slt, %141, %c0_i32_67 : i32
    %149 = vector.broadcast %148 : i1 to vector<1x32x1xi1>
    %150 = vector.broadcast %149 : vector<1x32x1xi1> to vector<1x32x1xi1>
    %151 = arith.xori %147, %150 : vector<1x32x1xi1>
    %152 = arith.andi %151, %145 : vector<1x32x1xi1>
    %153 = vector.broadcast %141 : i32 to vector<1x32x1xi32>
    %154 = arith.addi %143, %153 : vector<1x32x1xi32>
    %155 = arith.select %152, %154, %143 : vector<1x32x1xi1>, vector<1x32x1xi32>
    %c1_i32_68 = arith.constant 1 : i32
    %156 = vector.broadcast %c1_i32_68 : i32 to vector<1x32x1xi32>
    %157 = arith.cmpi sge, %155, %156 : vector<1x32x1xi32>
    %c0_i32_69 = arith.constant 0 : i32
    %158 = vector.broadcast %c0_i32_69 : i32 to vector<1x32x1xi32>
    %159 = arith.cmpi sle, %155, %158 : vector<1x32x1xi32>
    %cst_70 = arith.constant 0.000000e+00 : f32
    %160 = vector.broadcast %cst_70 : f32 to vector<2x32x128xf32>
    %c0_71 = arith.constant 0 : index
    %c13 = arith.constant 13 : index
    %c0_72 = arith.constant 0 : index
    %161 = vector.load %arg8[%c0_71, %c13, %c0_72] : memref<2x64x128xf32, #tpu.memory_space<vmem>>, vector<2x32x128xf32>
    %c0_73 = arith.constant 0 : index
    %c14 = arith.constant 14 : index
    %c0_74 = arith.constant 0 : index
    %162 = vector.load %arg8[%c0_73, %c14, %c0_74] : memref<2x64x128xf32, #tpu.memory_space<vmem>>, vector<2x32x128xf32>
    %c0_75 = arith.constant 0 : index
    %c15_76 = arith.constant 15 : index
    %c0_77 = arith.constant 0 : index
    %163 = vector.load %arg8[%c0_75, %c15_76, %c0_77] : memref<2x64x128xf32, #tpu.memory_space<vmem>>, vector<2x32x128xf32>
    %cst_78 = arith.constant 0.000000e+00 : f32
    %164 = vector.shape_cast %157 : vector<1x32x1xi1> to vector<1x32x1xi1>
    %165 = vector.broadcast %164 : vector<1x32x1xi1> to vector<2x32x128xi1>
    %166 = vector.broadcast %cst_78 : f32 to vector<2x32x128xf32>
    %167 = arith.select %165, %161, %166 : vector<2x32x128xi1>, vector<2x32x128xf32>
    %168 = vector.extract_strided_slice %7 {offsets = [0, 0], sizes = [1, 128], strides = [1, 1]} : vector<9x128xf32> to vector<1x128xf32>
    %169 = vector.shape_cast %168 : vector<1x128xf32> to vector<128xf32>
    %170 = vector.shape_cast %169 : vector<128xf32> to vector<1x1x128xf32>
    %171 = vector.broadcast %170 : vector<1x1x128xf32> to vector<2x32x128xf32>
    %172 = arith.mulf %167, %171 : vector<2x32x128xf32>
    %173 = arith.addf %160, %172 : vector<2x32x128xf32>
    %174 = vector.extract_strided_slice %7 {offsets = [1, 0], sizes = [1, 128], strides = [1, 1]} : vector<9x128xf32> to vector<1x128xf32>
    %175 = vector.shape_cast %174 : vector<1x128xf32> to vector<128xf32>
    %176 = vector.shape_cast %175 : vector<128xf32> to vector<1x1x128xf32>
    %177 = vector.broadcast %176 : vector<1x1x128xf32> to vector<2x32x128xf32>
    %178 = arith.mulf %162, %177 : vector<2x32x128xf32>
    %179 = arith.addf %173, %178 : vector<2x32x128xf32>
    %cst_79 = arith.constant 0.000000e+00 : f32
    %180 = vector.shape_cast %159 : vector<1x32x1xi1> to vector<1x32x1xi1>
    %181 = vector.broadcast %180 : vector<1x32x1xi1> to vector<2x32x128xi1>
    %182 = vector.broadcast %cst_79 : f32 to vector<2x32x128xf32>
    %183 = arith.select %181, %163, %182 : vector<2x32x128xi1>, vector<2x32x128xf32>
    %184 = vector.extract_strided_slice %7 {offsets = [2, 0], sizes = [1, 128], strides = [1, 1]} : vector<9x128xf32> to vector<1x128xf32>
    %185 = vector.shape_cast %184 : vector<1x128xf32> to vector<128xf32>
    %186 = vector.shape_cast %185 : vector<128xf32> to vector<1x1x128xf32>
    %187 = vector.broadcast %186 : vector<1x1x128xf32> to vector<2x32x128xf32>
    %188 = arith.mulf %183, %187 : vector<2x32x128xf32>
    %189 = arith.addf %179, %188 : vector<2x32x128xf32>
    %c0_80 = arith.constant 0 : index
    %c15_81 = arith.constant 15 : index
    %c0_82 = arith.constant 0 : index
    %190 = vector.load %arg8[%c0_80, %c15_81, %c0_82] : memref<2x64x128xf32, #tpu.memory_space<vmem>>, vector<2x32x128xf32>
    %c0_83 = arith.constant 0 : index
    %c16_84 = arith.constant 16 : index
    %c0_85 = arith.constant 0 : index
    %191 = vector.load %arg8[%c0_83, %c16_84, %c0_85] : memref<2x64x128xf32, #tpu.memory_space<vmem>>, vector<2x32x128xf32>
    %c0_86 = arith.constant 0 : index
    %c17_87 = arith.constant 17 : index
    %c0_88 = arith.constant 0 : index
    %192 = vector.load %arg8[%c0_86, %c17_87, %c0_88] : memref<2x64x128xf32, #tpu.memory_space<vmem>>, vector<2x32x128xf32>
    %cst_89 = arith.constant 0.000000e+00 : f32
    %193 = vector.shape_cast %157 : vector<1x32x1xi1> to vector<1x32x1xi1>
    %194 = vector.broadcast %193 : vector<1x32x1xi1> to vector<2x32x128xi1>
    %195 = vector.broadcast %cst_89 : f32 to vector<2x32x128xf32>
    %196 = arith.select %194, %190, %195 : vector<2x32x128xi1>, vector<2x32x128xf32>
    %197 = vector.extract_strided_slice %7 {offsets = [3, 0], sizes = [1, 128], strides = [1, 1]} : vector<9x128xf32> to vector<1x128xf32>
    %198 = vector.shape_cast %197 : vector<1x128xf32> to vector<128xf32>
    %199 = vector.shape_cast %198 : vector<128xf32> to vector<1x1x128xf32>
    %200 = vector.broadcast %199 : vector<1x1x128xf32> to vector<2x32x128xf32>
    %201 = arith.mulf %196, %200 : vector<2x32x128xf32>
    %202 = arith.addf %189, %201 : vector<2x32x128xf32>
    %203 = vector.extract_strided_slice %7 {offsets = [4, 0], sizes = [1, 128], strides = [1, 1]} : vector<9x128xf32> to vector<1x128xf32>
    %204 = vector.shape_cast %203 : vector<1x128xf32> to vector<128xf32>
    %205 = vector.shape_cast %204 : vector<128xf32> to vector<1x1x128xf32>
    %206 = vector.broadcast %205 : vector<1x1x128xf32> to vector<2x32x128xf32>
    %207 = arith.mulf %191, %206 : vector<2x32x128xf32>
    %208 = arith.addf %202, %207 : vector<2x32x128xf32>
    %cst_90 = arith.constant 0.000000e+00 : f32
    %209 = vector.shape_cast %159 : vector<1x32x1xi1> to vector<1x32x1xi1>
    %210 = vector.broadcast %209 : vector<1x32x1xi1> to vector<2x32x128xi1>
    %211 = vector.broadcast %cst_90 : f32 to vector<2x32x128xf32>
    %212 = arith.select %210, %192, %211 : vector<2x32x128xi1>, vector<2x32x128xf32>
    %213 = vector.extract_strided_slice %7 {offsets = [5, 0], sizes = [1, 128], strides = [1, 1]} : vector<9x128xf32> to vector<1x128xf32>
    %214 = vector.shape_cast %213 : vector<1x128xf32> to vector<128xf32>
    %215 = vector.shape_cast %214 : vector<128xf32> to vector<1x1x128xf32>
    %216 = vector.broadcast %215 : vector<1x1x128xf32> to vector<2x32x128xf32>
    %217 = arith.mulf %212, %216 : vector<2x32x128xf32>
    %218 = arith.addf %208, %217 : vector<2x32x128xf32>
    %c0_91 = arith.constant 0 : index
    %c17_92 = arith.constant 17 : index
    %c0_93 = arith.constant 0 : index
    %219 = vector.load %arg8[%c0_91, %c17_92, %c0_93] : memref<2x64x128xf32, #tpu.memory_space<vmem>>, vector<2x32x128xf32>
    %c0_94 = arith.constant 0 : index
    %c18 = arith.constant 18 : index
    %c0_95 = arith.constant 0 : index
    %220 = vector.load %arg8[%c0_94, %c18, %c0_95] : memref<2x64x128xf32, #tpu.memory_space<vmem>>, vector<2x32x128xf32>
    %c0_96 = arith.constant 0 : index
    %c19 = arith.constant 19 : index
    %c0_97 = arith.constant 0 : index
    %221 = vector.load %arg8[%c0_96, %c19, %c0_97] : memref<2x64x128xf32, #tpu.memory_space<vmem>>, vector<2x32x128xf32>
    %cst_98 = arith.constant 0.000000e+00 : f32
    %222 = vector.shape_cast %157 : vector<1x32x1xi1> to vector<1x32x1xi1>
    %223 = vector.broadcast %222 : vector<1x32x1xi1> to vector<2x32x128xi1>
    %224 = vector.broadcast %cst_98 : f32 to vector<2x32x128xf32>
    %225 = arith.select %223, %219, %224 : vector<2x32x128xi1>, vector<2x32x128xf32>
    %226 = vector.extract_strided_slice %7 {offsets = [6, 0], sizes = [1, 128], strides = [1, 1]} : vector<9x128xf32> to vector<1x128xf32>
    %227 = vector.shape_cast %226 : vector<1x128xf32> to vector<128xf32>
    %228 = vector.shape_cast %227 : vector<128xf32> to vector<1x1x128xf32>
    %229 = vector.broadcast %228 : vector<1x1x128xf32> to vector<2x32x128xf32>
    %230 = arith.mulf %225, %229 : vector<2x32x128xf32>
    %231 = arith.addf %218, %230 : vector<2x32x128xf32>
    %232 = vector.extract_strided_slice %7 {offsets = [7, 0], sizes = [1, 128], strides = [1, 1]} : vector<9x128xf32> to vector<1x128xf32>
    %233 = vector.shape_cast %232 : vector<1x128xf32> to vector<128xf32>
    %234 = vector.shape_cast %233 : vector<128xf32> to vector<1x1x128xf32>
    %235 = vector.broadcast %234 : vector<1x1x128xf32> to vector<2x32x128xf32>
    %236 = arith.mulf %220, %235 : vector<2x32x128xf32>
    %237 = arith.addf %231, %236 : vector<2x32x128xf32>
    %cst_99 = arith.constant 0.000000e+00 : f32
    %238 = vector.shape_cast %159 : vector<1x32x1xi1> to vector<1x32x1xi1>
    %239 = vector.broadcast %238 : vector<1x32x1xi1> to vector<2x32x128xi1>
    %240 = vector.broadcast %cst_99 : f32 to vector<2x32x128xf32>
    %241 = arith.select %239, %221, %240 : vector<2x32x128xi1>, vector<2x32x128xf32>
    %242 = vector.extract_strided_slice %7 {offsets = [8, 0], sizes = [1, 128], strides = [1, 1]} : vector<9x128xf32> to vector<1x128xf32>
    %243 = vector.shape_cast %242 : vector<1x128xf32> to vector<128xf32>
    %244 = vector.shape_cast %243 : vector<128xf32> to vector<1x1x128xf32>
    %245 = vector.broadcast %244 : vector<1x1x128xf32> to vector<2x32x128xf32>
    %246 = arith.mulf %241, %245 : vector<2x32x128xf32>
    %247 = arith.addf %237, %246 : vector<2x32x128xf32>
    %248 = vector.shape_cast %8 : vector<1x128xf32> to vector<1x1x128xf32>
    %249 = vector.broadcast %248 : vector<1x1x128xf32> to vector<2x32x128xf32>
    %250 = arith.addf %247, %249 : vector<2x32x128xf32>
    %cst_100 = arith.constant 0.000000e+00 : f32
    %251 = vector.broadcast %cst_100 : f32 to vector<2x32x128xf32>
    %252 = arith.maximumf %250, %251 : vector<2x32x128xf32>
    %253 = vector.shape_cast %252 : vector<2x32x128xf32> to vector<64x128xf32>
    %254 = arith.truncf %253 : vector<64x128xf32> to vector<64x128xbf16>
    %cst_101 = arith.constant dense<0.000000e+00> : vector<64x128xf32>
    %255 = tpu.matmul %254, %10, %cst_101 {dimension_numbers = #tpu.dot_dimension_numbers<[1], [0], [0], [1], [0, 0, 1, 1], [], []>} : vector<64x128xbf16>, vector<128x128xbf16>, vector<64x128xf32> -> vector<64x128xf32>
    %256 = vector.broadcast %9 : vector<1x128xf32> to vector<64x128xf32>
    %257 = arith.addf %255, %256 : vector<64x128xf32>
    %cst_102 = arith.constant 0.000000e+00 : f32
    %258 = vector.broadcast %cst_102 : f32 to vector<64x128xf32>
    %259 = arith.maximumf %257, %258 : vector<64x128xf32>
    %260 = vector.shape_cast %259 : vector<64x128xf32> to vector<2x32x128xf32>
    %c0_103 = arith.constant 0 : index
    %c0_104 = arith.constant 0 : index
    %c0_105 = arith.constant 0 : index
    %261 = vector.load %arg7[%c0_103, %c0_104, %c0_105] : memref<2x32x128xf32, #tpu.memory_space<vmem>>, vector<2x32x128xf32>
    %262 = vector.extract_strided_slice %11 {offsets = [0, 0, 1], sizes = [2, 32, 1], strides = [1, 1, 1]} : vector<2x32x3xf32> to vector<2x32x1xf32>
    %263 = vector.broadcast %262 : vector<2x32x1xf32> to vector<2x32x128xf32>
    %264 = arith.mulf %263, %260 : vector<2x32x128xf32>
    %265 = arith.addf %261, %264 : vector<2x32x128xf32>
    %c0_106 = arith.constant 0 : index
    %c0_107 = arith.constant 0 : index
    %c0_108 = arith.constant 0 : index
    %266 = vector.load %arg7[%c0_106, %c0_107, %c0_108] : memref<2x32x128xf32, #tpu.memory_space<vmem>>, vector<2x32x128xf32>
    tpu.vector_store %arg7[%c0_106, %c0_107, %c0_108], %265 {strides = array<i32>} : memref<2x32x128xf32, #tpu.memory_space<vmem>>, vector<2x32x128xf32>,
    %c4_i32 = arith.constant 4 : i32
    %c0_i32_109 = arith.constant 0 : i32
    %267 = arith.cmpi eq, %c4_i32, %c0_i32_109 : i32
    %c1_i32_110 = arith.constant 1 : i32
    %268 = arith.select %267, %c1_i32_110, %c4_i32 : i32
    %269 = vector.broadcast %268 : i32 to vector<1x32x1xi32>
    %270 = arith.remsi %12, %269 : vector<1x32x1xi32>
    %c0_i32_111 = arith.constant 0 : i32
    %271 = vector.broadcast %c0_i32_111 : i32 to vector<1x32x1xi32>
    %272 = arith.cmpi ne, %270, %271 : vector<1x32x1xi32>
    %c0_i32_112 = arith.constant 0 : i32
    %273 = vector.broadcast %c0_i32_112 : i32 to vector<1x32x1xi32>
    %274 = arith.cmpi slt, %270, %273 : vector<1x32x1xi32>
    %c0_i32_113 = arith.constant 0 : i32
    %275 = arith.cmpi slt, %268, %c0_i32_113 : i32
    %276 = vector.broadcast %275 : i1 to vector<1x32x1xi1>
    %277 = vector.broadcast %276 : vector<1x32x1xi1> to vector<1x32x1xi1>
    %278 = arith.xori %274, %277 : vector<1x32x1xi1>
    %279 = arith.andi %278, %272 : vector<1x32x1xi1>
    %280 = vector.broadcast %268 : i32 to vector<1x32x1xi32>
    %281 = arith.addi %270, %280 : vector<1x32x1xi32>
    %282 = arith.select %279, %281, %270 : vector<1x32x1xi1>, vector<1x32x1xi32>
    %c1_i32_114 = arith.constant 1 : i32
    %283 = vector.broadcast %c1_i32_114 : i32 to vector<1x32x1xi32>
    %284 = arith.cmpi sge, %282, %283 : vector<1x32x1xi32>
    %c2_i32_115 = arith.constant 2 : i32
    %285 = vector.broadcast %c2_i32_115 : i32 to vector<1x32x1xi32>
    %286 = arith.cmpi sle, %282, %285 : vector<1x32x1xi32>
    %cst_116 = arith.constant 0.000000e+00 : f32
    %287 = vector.broadcast %cst_116 : f32 to vector<2x32x128xf32>
    %c0_117 = arith.constant 0 : index
    %c11 = arith.constant 11 : index
    %c0_118 = arith.constant 0 : index
    %288 = vector.load %arg8[%c0_117, %c11, %c0_118] : memref<2x64x128xf32, #tpu.memory_space<vmem>>, vector<2x32x128xf32>
    %c0_119 = arith.constant 0 : index
    %c12 = arith.constant 12 : index
    %c0_120 = arith.constant 0 : index
    %289 = vector.load %arg8[%c0_119, %c12, %c0_120] : memref<2x64x128xf32, #tpu.memory_space<vmem>>, vector<2x32x128xf32>
    %c0_121 = arith.constant 0 : index
    %c13_122 = arith.constant 13 : index
    %c0_123 = arith.constant 0 : index
    %290 = vector.load %arg8[%c0_121, %c13_122, %c0_123] : memref<2x64x128xf32, #tpu.memory_space<vmem>>, vector<2x32x128xf32>
    %cst_124 = arith.constant 0.000000e+00 : f32
    %291 = vector.shape_cast %284 : vector<1x32x1xi1> to vector<1x32x1xi1>
    %292 = vector.broadcast %291 : vector<1x32x1xi1> to vector<2x32x128xi1>
    %293 = vector.broadcast %cst_124 : f32 to vector<2x32x128xf32>
    %294 = arith.select %292, %288, %293 : vector<2x32x128xi1>, vector<2x32x128xf32>
    %295 = vector.extract_strided_slice %7 {offsets = [0, 0], sizes = [1, 128], strides = [1, 1]} : vector<9x128xf32> to vector<1x128xf32>
    %296 = vector.shape_cast %295 : vector<1x128xf32> to vector<128xf32>
    %297 = vector.shape_cast %296 : vector<128xf32> to vector<1x1x128xf32>
    %298 = vector.broadcast %297 : vector<1x1x128xf32> to vector<2x32x128xf32>
    %299 = arith.mulf %294, %298 : vector<2x32x128xf32>
    %300 = arith.addf %287, %299 : vector<2x32x128xf32>
    %301 = vector.extract_strided_slice %7 {offsets = [1, 0], sizes = [1, 128], strides = [1, 1]} : vector<9x128xf32> to vector<1x128xf32>
    %302 = vector.shape_cast %301 : vector<1x128xf32> to vector<128xf32>
    %303 = vector.shape_cast %302 : vector<128xf32> to vector<1x1x128xf32>
    %304 = vector.broadcast %303 : vector<1x1x128xf32> to vector<2x32x128xf32>
    %305 = arith.mulf %289, %304 : vector<2x32x128xf32>
    %306 = arith.addf %300, %305 : vector<2x32x128xf32>
    %cst_125 = arith.constant 0.000000e+00 : f32
    %307 = vector.shape_cast %286 : vector<1x32x1xi1> to vector<1x32x1xi1>
    %308 = vector.broadcast %307 : vector<1x32x1xi1> to vector<2x32x128xi1>
    %309 = vector.broadcast %cst_125 : f32 to vector<2x32x128xf32>
    %310 = arith.select %308, %290, %309 : vector<2x32x128xi1>, vector<2x32x128xf32>
    %311 = vector.extract_strided_slice %7 {offsets = [2, 0], sizes = [1, 128], strides = [1, 1]} : vector<9x128xf32> to vector<1x128xf32>
    %312 = vector.shape_cast %311 : vector<1x128xf32> to vector<128xf32>
    %313 = vector.shape_cast %312 : vector<128xf32> to vector<1x1x128xf32>
    %314 = vector.broadcast %313 : vector<1x1x128xf32> to vector<2x32x128xf32>
    %315 = arith.mulf %310, %314 : vector<2x32x128xf32>
    %316 = arith.addf %306, %315 : vector<2x32x128xf32>
    %c0_126 = arith.constant 0 : index
    %c15_127 = arith.constant 15 : index
    %c0_128 = arith.constant 0 : index
    %317 = vector.load %arg8[%c0_126, %c15_127, %c0_128] : memref<2x64x128xf32, #tpu.memory_space<vmem>>, vector<2x32x128xf32>
    %c0_129 = arith.constant 0 : index
    %c16_130 = arith.constant 16 : index
    %c0_131 = arith.constant 0 : index
    %318 = vector.load %arg8[%c0_129, %c16_130, %c0_131] : memref<2x64x128xf32, #tpu.memory_space<vmem>>, vector<2x32x128xf32>
    %c0_132 = arith.constant 0 : index
    %c17_133 = arith.constant 17 : index
    %c0_134 = arith.constant 0 : index
    %319 = vector.load %arg8[%c0_132, %c17_133, %c0_134] : memref<2x64x128xf32, #tpu.memory_space<vmem>>, vector<2x32x128xf32>
    %cst_135 = arith.constant 0.000000e+00 : f32
    %320 = vector.shape_cast %284 : vector<1x32x1xi1> to vector<1x32x1xi1>
    %321 = vector.broadcast %320 : vector<1x32x1xi1> to vector<2x32x128xi1>
    %322 = vector.broadcast %cst_135 : f32 to vector<2x32x128xf32>
    %323 = arith.select %321, %317, %322 : vector<2x32x128xi1>, vector<2x32x128xf32>
    %324 = vector.extract_strided_slice %7 {offsets = [3, 0], sizes = [1, 128], strides = [1, 1]} : vector<9x128xf32> to vector<1x128xf32>
    %325 = vector.shape_cast %324 : vector<1x128xf32> to vector<128xf32>
    %326 = vector.shape_cast %325 : vector<128xf32> to vector<1x1x128xf32>
    %327 = vector.broadcast %326 : vector<1x1x128xf32> to vector<2x32x128xf32>
    %328 = arith.mulf %323, %327 : vector<2x32x128xf32>
    %329 = arith.addf %316, %328 : vector<2x32x128xf32>
    %330 = vector.extract_strided_slice %7 {offsets = [4, 0], sizes = [1, 128], strides = [1, 1]} : vector<9x128xf32> to vector<1x128xf32>
    %331 = vector.shape_cast %330 : vector<1x128xf32> to vector<128xf32>
    %332 = vector.shape_cast %331 : vector<128xf32> to vector<1x1x128xf32>
    %333 = vector.broadcast %332 : vector<1x1x128xf32> to vector<2x32x128xf32>
    %334 = arith.mulf %318, %333 : vector<2x32x128xf32>
    %335 = arith.addf %329, %334 : vector<2x32x128xf32>
    %cst_136 = arith.constant 0.000000e+00 : f32
    %336 = vector.shape_cast %286 : vector<1x32x1xi1> to vector<1x32x1xi1>
    %337 = vector.broadcast %336 : vector<1x32x1xi1> to vector<2x32x128xi1>
    %338 = vector.broadcast %cst_136 : f32 to vector<2x32x128xf32>
    %339 = arith.select %337, %319, %338 : vector<2x32x128xi1>, vector<2x32x128xf32>
    %340 = vector.extract_strided_slice %7 {offsets = [5, 0], sizes = [1, 128], strides = [1, 1]} : vector<9x128xf32> to vector<1x128xf32>
    %341 = vector.shape_cast %340 : vector<1x128xf32> to vector<128xf32>
    %342 = vector.shape_cast %341 : vector<128xf32> to vector<1x1x128xf32>
    %343 = vector.broadcast %342 : vector<1x1x128xf32> to vector<2x32x128xf32>
    %344 = arith.mulf %339, %343 : vector<2x32x128xf32>
    %345 = arith.addf %335, %344 : vector<2x32x128xf32>
    %c0_137 = arith.constant 0 : index
    %c19_138 = arith.constant 19 : index
    %c0_139 = arith.constant 0 : index
    %346 = vector.load %arg8[%c0_137, %c19_138, %c0_139] : memref<2x64x128xf32, #tpu.memory_space<vmem>>, vector<2x32x128xf32>
    %c0_140 = arith.constant 0 : index
    %c20 = arith.constant 20 : index
    %c0_141 = arith.constant 0 : index
    %347 = vector.load %arg8[%c0_140, %c20, %c0_141] : memref<2x64x128xf32, #tpu.memory_space<vmem>>, vector<2x32x128xf32>
    %c0_142 = arith.constant 0 : index
    %c21 = arith.constant 21 : index
    %c0_143 = arith.constant 0 : index
    %348 = vector.load %arg8[%c0_142, %c21, %c0_143] : memref<2x64x128xf32, #tpu.memory_space<vmem>>, vector<2x32x128xf32>
    %cst_144 = arith.constant 0.000000e+00 : f32
    %349 = vector.shape_cast %284 : vector<1x32x1xi1> to vector<1x32x1xi1>
    %350 = vector.broadcast %349 : vector<1x32x1xi1> to vector<2x32x128xi1>
    %351 = vector.broadcast %cst_144 : f32 to vector<2x32x128xf32>
    %352 = arith.select %350, %346, %351 : vector<2x32x128xi1>, vector<2x32x128xf32>
    %353 = vector.extract_strided_slice %7 {offsets = [6, 0], sizes = [1, 128], strides = [1, 1]} : vector<9x128xf32> to vector<1x128xf32>
    %354 = vector.shape_cast %353 : vector<1x128xf32> to vector<128xf32>
    %355 = vector.shape_cast %354 : vector<128xf32> to vector<1x1x128xf32>
    %356 = vector.broadcast %355 : vector<1x1x128xf32> to vector<2x32x128xf32>
    %357 = arith.mulf %352, %356 : vector<2x32x128xf32>
    %358 = arith.addf %345, %357 : vector<2x32x128xf32>
    %359 = vector.extract_strided_slice %7 {offsets = [7, 0], sizes = [1, 128], strides = [1, 1]} : vector<9x128xf32> to vector<1x128xf32>
    %360 = vector.shape_cast %359 : vector<1x128xf32> to vector<128xf32>
    %361 = vector.shape_cast %360 : vector<128xf32> to vector<1x1x128xf32>
    %362 = vector.broadcast %361 : vector<1x1x128xf32> to vector<2x32x128xf32>
    %363 = arith.mulf %347, %362 : vector<2x32x128xf32>
    %364 = arith.addf %358, %363 : vector<2x32x128xf32>
    %cst_145 = arith.constant 0.000000e+00 : f32
    %365 = vector.shape_cast %286 : vector<1x32x1xi1> to vector<1x32x1xi1>
    %366 = vector.broadcast %365 : vector<1x32x1xi1> to vector<2x32x128xi1>
    %367 = vector.broadcast %cst_145 : f32 to vector<2x32x128xf32>
    %368 = arith.select %366, %348, %367 : vector<2x32x128xi1>, vector<2x32x128xf32>
    %369 = vector.extract_strided_slice %7 {offsets = [8, 0], sizes = [1, 128], strides = [1, 1]} : vector<9x128xf32> to vector<1x128xf32>
    %370 = vector.shape_cast %369 : vector<1x128xf32> to vector<128xf32>
    %371 = vector.shape_cast %370 : vector<128xf32> to vector<1x1x128xf32>
    %372 = vector.broadcast %371 : vector<1x1x128xf32> to vector<2x32x128xf32>
    %373 = arith.mulf %368, %372 : vector<2x32x128xf32>
    %374 = arith.addf %364, %373 : vector<2x32x128xf32>
    %375 = vector.shape_cast %8 : vector<1x128xf32> to vector<1x1x128xf32>
    %376 = vector.broadcast %375 : vector<1x1x128xf32> to vector<2x32x128xf32>
    %377 = arith.addf %374, %376 : vector<2x32x128xf32>
    %cst_146 = arith.constant 0.000000e+00 : f32
    %378 = vector.broadcast %cst_146 : f32 to vector<2x32x128xf32>
    %379 = arith.maximumf %377, %378 : vector<2x32x128xf32>
    %380 = vector.shape_cast %379 : vector<2x32x128xf32> to vector<64x128xf32>
    %381 = arith.truncf %380 : vector<64x128xf32> to vector<64x128xbf16>
    %cst_147 = arith.constant dense<0.000000e+00> : vector<64x128xf32>
    %382 = tpu.matmul %381, %10, %cst_147 {dimension_numbers = #tpu.dot_dimension_numbers<[1], [0], [0], [1], [0, 0, 1, 1], [], []>} : vector<64x128xbf16>, vector<128x128xbf16>, vector<64x128xf32> -> vector<64x128xf32>
    %383 = vector.broadcast %9 : vector<1x128xf32> to vector<64x128xf32>
    %384 = arith.addf %382, %383 : vector<64x128xf32>
    %cst_148 = arith.constant 0.000000e+00 : f32
    %385 = vector.broadcast %cst_148 : f32 to vector<64x128xf32>
    %386 = arith.maximumf %384, %385 : vector<64x128xf32>
    %387 = vector.shape_cast %386 : vector<64x128xf32> to vector<2x32x128xf32>
    %c0_149 = arith.constant 0 : index
    %c0_150 = arith.constant 0 : index
    %c0_151 = arith.constant 0 : index
    %388 = vector.load %arg7[%c0_149, %c0_150, %c0_151] : memref<2x32x128xf32, #tpu.memory_space<vmem>>, vector<2x32x128xf32>
    %389 = vector.extract_strided_slice %11 {offsets = [0, 0, 2], sizes = [2, 32, 1], strides = [1, 1, 1]} : vector<2x32x3xf32> to vector<2x32x1xf32>
    %390 = vector.broadcast %389 : vector<2x32x1xf32> to vector<2x32x128xf32>
    %391 = arith.mulf %390, %387 : vector<2x32x128xf32>
    %392 = arith.addf %388, %391 : vector<2x32x128xf32>
    %c0_152 = arith.constant 0 : index
    %c0_153 = arith.constant 0 : index
    %c0_154 = arith.constant 0 : index
    %393 = vector.load %arg7[%c0_152, %c0_153, %c0_154] : memref<2x32x128xf32, #tpu.memory_space<vmem>>, vector<2x32x128xf32>
    tpu.vector_store %arg7[%c0_152, %c0_153, %c0_154], %392 {strides = array<i32>} : memref<2x32x128xf32, #tpu.memory_space<vmem>>, vector<2x32x128xf32>,
    return
  }
  func.func @transform_0(%arg0: i32) -> (i32, i32, i32) {
    %c0_i32 = arith.constant 0 : i32
    %c0_i32_0 = arith.constant 0 : i32
    %c0_i32_1 = arith.constant 0 : i32
    return %arg0, %c0_i32, %c0_i32_0 : i32, i32, i32
  }
  func.func @transform_1(%arg0: i32) -> (i32, i32, i32) {
    %c0_i32 = arith.constant 0 : i32
    %c0_i32_0 = arith.constant 0 : i32
    %c0_i32_1 = arith.constant 0 : i32
    return %arg0, %c0_i32, %c0_i32_0 : i32, i32, i32
  }
  func.func @transform_2(%arg0: i32) -> (i32, i32) {
    %c0_i32 = arith.constant 0 : i32
    %c0_i32_0 = arith.constant 0 : i32
    %c0_i32_1 = arith.constant 0 : i32
    return %c0_i32, %c0_i32_0 : i32, i32
  }
  func.func @transform_3(%arg0: i32) -> (i32, i32) {
    %c0_i32 = arith.constant 0 : i32
    %c0_i32_0 = arith.constant 0 : i32
    %c0_i32_1 = arith.constant 0 : i32
    return %c0_i32, %c0_i32_0 : i32, i32
  }
  func.func @transform_4(%arg0: i32) -> (i32, i32) {
    %c0_i32 = arith.constant 0 : i32
    %c0_i32_0 = arith.constant 0 : i32
    %c0_i32_1 = arith.constant 0 : i32
    return %c0_i32, %c0_i32_0 : i32, i32
  }
  func.func @transform_5(%arg0: i32) -> (i32, i32) {
    %c0_i32 = arith.constant 0 : i32
    %c0_i32_0 = arith.constant 0 : i32
    %c0_i32_1 = arith.constant 0 : i32
    return %c0_i32, %c0_i32_0 : i32, i32
  }
  func.func @transform_6(%arg0: i32) -> (i32, i32, i32) {
    %c0_i32 = arith.constant 0 : i32
    %c0_i32_0 = arith.constant 0 : i32
    %c0_i32_1 = arith.constant 0 : i32
    return %arg0, %c0_i32, %c0_i32_0 : i32, i32, i32
  }
}

</mosaic_0001>

<llo_original>
// kernel: tpu_custom_call.1
$region0: #{tpu_custom_call.1}
  #allocation0 [shape = 'u32[]', space=smem, size = 0x4, offset = 0x4, fixed_abs, tag = 'smem constant byte address 0x4 - core index']
  #allocation1 [shape = 'u32[72,128]{1,0:T(1,128)}', space=vmem, size = 0x9000, scoped, tag = 'internal scratch']
  #allocation2 [shape = 'f32[2,64,128]{2,1,0:T(8,128)}', space=vmem, size = 0x10000, scoped, tag = 'scratch operand']
  %s0 = inlined_call_operand.vmem [shape: f32[2,32,128], index: 0, kind: input, shape index: {}]
  %s1 = inlined_call_operand.vmem [shape: f32[2,32,3], index: 1, kind: input, shape index: {}]
  %s2 = inlined_call_operand.hbm [shape: f32[9,128], index: 2, kind: input, shape index: {}]
  %s3 = inlined_call_operand.vmem [shape: f32[1,128], index: 3, kind: input, shape index: {}]
  %s4 = inlined_call_operand.hbm [shape: bf16[128,128], index: 4, kind: input, shape index: {}]
  %s5 = inlined_call_operand.vmem [shape: f32[1,128], index: 5, kind: input, shape index: {}]
  %s6 = inlined_call_operand.hbm [shape: f32[2,32,128], index: 6, kind: output, shape index: {}]
  %s7 = sld [smem:[#allocation0]]
  $region42: #{tpu_custom_call.1} parent=0
    _
  %s9 = ssub.s32 1, %s7
  %s10 = scalar_select 0, %s9, %s7
  $region1: #{tpu_custom_call.1} parent=0
    #allocation3 [shape = 'u8[8192]{0}', space=vmem, size = 0x2000, scoped, tag = 'input window, operand 2, single buffered']
    #allocation4 [shape = 's32[1]{0}', space=sflag, size = 0x4, scoped, tag = 'scoped memory for tpu_custom_call.1']
    #allocation5 [shape = 's32[1]{0}', space=sflag, size = 0x4, scoped, tag = 'scoped memory for tpu_custom_call.1']
    #allocation6 [shape = 'u8[32768]{0}', space=vmem, size = 0x8000, scoped, tag = 'input window, operand 4, single buffered']
    #allocation7 [shape = 's32[1]{0}', space=sflag, size = 0x4, scoped, tag = 'scoped memory for tpu_custom_call.1']
    #allocation8 [shape = 'u8[32768]{0}', space=vmem, size = 0x8000, scoped, tag = 'output window, operand 0, single buffered']
    %11 = vsyncpa [#allocation4], 0
    %12 = vsyncpa [#allocation7], 0
    %13 = vsyncpa [#allocation5], 0
    // Predicated region
    $region2: #{tpu_custom_call.1} parent=1 // pred_check
      _
    $region3: #{tpu_custom_call.1} parent=1 // pred_check_branch
      %15 = sbr.rel (0) target = $region5
    $region4: #{tpu_custom_call.1} parent=1 // pred_region
      _
    $region5: #{tpu_custom_call.1} parent=1 // pred_fallthru
      _
    // Predicated region
    $region6: #{tpu_custom_call.1} parent=1 // pred_check
      _
    $region7: #{tpu_custom_call.1} parent=1 // pred_check_branch
      %17 = sbr.rel (0) target = $region9
    $region8: #{tpu_custom_call.1} parent=1 // pred_region
      _
    $region9: #{tpu_custom_call.1} parent=1 // pred_fallthru
      _
    // Predicated region
    $region10: #{tpu_custom_call.1} parent=1 // pred_check
      _
    $region11: #{tpu_custom_call.1} parent=1 // pred_check_branch
      %19 = sbr.rel (0) target = $region13
    $region12: #{tpu_custom_call.1} parent=1 // pred_region
      %21 = vsyncadd [#allocation4], 0
      %s22 = sshll.u32 %s2, 4
      %s23 = int_to_ptr.hbm [resolvable:$true] %s22
      %s24 = sshll.u32 [#allocation3], 4
      %s25 = int_to_ptr.vmem [resolvable:$true] %s24
      %30 = dma.hbm_to_vmem [thread:$0]  %s23, 256, %s25, [#allocation4], 128, 128, 8
    $region13: #{tpu_custom_call.1} parent=1 // pred_fallthru
      _
    // Predicated region
    $region14: #{tpu_custom_call.1} parent=1 // pred_check
      _
    $region15: #{tpu_custom_call.1} parent=1 // pred_check_branch
      %32 = sbr.rel (0) target = $region17
    $region16: #{tpu_custom_call.1} parent=1 // pred_region
      _
    $region17: #{tpu_custom_call.1} parent=1 // pred_fallthru
      _
    // Predicated region
    $region18: #{tpu_custom_call.1} parent=1 // pred_check
      _
    $region19: #{tpu_custom_call.1} parent=1 // pred_check_branch
      %34 = sbr.rel (0) target = $region21
    $region20: #{tpu_custom_call.1} parent=1 // pred_region
      %36 = vsyncadd [#allocation7], 0
      %s37 = sshll.u32 %s4, 4
      %s38 = int_to_ptr.hbm [resolvable:$true] %s37
      %s39 = sshll.u32 [#allocation6], 4
      %s40 = int_to_ptr.vmem [resolvable:$true] %s39
      %45 = dma.hbm_to_vmem [thread:$0]  %s38, 1024, %s40, [#allocation7], 64, 64, 4
    $region21: #{tpu_custom_call.1} parent=1 // pred_fallthru
      _
    // Predicated region
    $region22: #{tpu_custom_call.1} parent=1 // pred_check
      _
    $region23: #{tpu_custom_call.1} parent=1 // pred_check_branch
      %47 = sbr.rel (0) target = $region25
    $region24: #{tpu_custom_call.1} parent=1 // pred_region
      _
    $region25: #{tpu_custom_call.1} parent=1 // pred_fallthru
      _
    // Predicated region
    $region26: #{tpu_custom_call.1} parent=1 // pred_check
      _
    $region27: #{tpu_custom_call.1} parent=1 // pred_check_branch
      %49 = sbr.rel (0) target = $region29
    $region28: #{tpu_custom_call.1} parent=1 // pred_region
      %51 = dma.done [#allocation4], 256
    $region29: #{tpu_custom_call.1} parent=1 // pred_fallthru
      _
    // Predicated region
    $region30: #{tpu_custom_call.1} parent=1 // pred_check
      _
    $region31: #{tpu_custom_call.1} parent=1 // pred_check_branch
      %53 = sbr.rel (0) target = $region33
    $region32: #{tpu_custom_call.1} parent=1 // pred_region
      %55 = dma.done [#allocation7], 1024
    $region33: #{tpu_custom_call.1} parent=1 // pred_fallthru
      _
    %v56 = vld [vmem:[%s0] sm:$0xff]
    %v57 = vld [vmem:[%s0 + $0x8] sm:$0xff]
    %v58 = vld [vmem:[%s0 + $0x10] sm:$0xff]
    %v59 = vld [vmem:[%s0 + $0x18] sm:$0xff]
    %v60 = vld [vmem:[%s0 + $0x20] sm:$0xff]
    %v61 = vld [vmem:[%s0 + $0x28] sm:$0xff]
    %v62 = vld [vmem:[%s0 + $0x30] sm:$0xff]
    %v63 = vld [vmem:[%s0 + $0x38] sm:$0xff]
    %64 = vst [vmem:[#allocation2] sm:$0xff] 0.0
    %65 = vst [vmem:[#allocation2 + $0x8] sm:$0xff] 0.0
    %66 = vst [vmem:[#allocation2 + $0x40] sm:$0xff] 0.0
    %67 = vst [vmem:[#allocation2 + $0x48] sm:$0xff] 0.0
    %68 = vst [vmem:[#allocation2 + $0x30] sm:$0xff] 0.0
    %69 = vst [vmem:[#allocation2 + $0x38] sm:$0xff] 0.0
    %70 = vst [vmem:[#allocation2 + $0x70] sm:$0xff] 0.0
    %71 = vst [vmem:[#allocation2 + $0x78] sm:$0xff] 0.0
    %72 = vst [vmem:[#allocation2 + $0x10] sm:$0xff] %v56
    %73 = vst [vmem:[#allocation2 + $0x18] sm:$0xff] %v57
    %74 = vst [vmem:[#allocation2 + $0x20] sm:$0xff] %v58
    %75 = vst [vmem:[#allocation2 + $0x28] sm:$0xff] %v59
    %76 = vst [vmem:[#allocation2 + $0x50] sm:$0xff] %v60
    %77 = vst [vmem:[#allocation2 + $0x58] sm:$0xff] %v61
    %78 = vst [vmem:[#allocation2 + $0x60] sm:$0xff] %v62
    %79 = vst [vmem:[#allocation2 + $0x68] sm:$0xff] %v63
    %80 = vst [vmem:[#allocation8] sm:$0xff] %v56
    %81 = vst [vmem:[#allocation8 + $0x8] sm:$0xff] %v57
    %82 = vst [vmem:[#allocation8 + $0x10] sm:$0xff] %v58
    %83 = vst [vmem:[#allocation8 + $0x18] sm:$0xff] %v59
    %84 = vst [vmem:[#allocation8 + $0x20] sm:$0xff] %v60
    %85 = vst [vmem:[#allocation8 + $0x28] sm:$0xff] %v61
    %86 = vst [vmem:[#allocation8 + $0x30] sm:$0xff] %v62
    %87 = vst [vmem:[#allocation8 + $0x38] sm:$0xff] %v63
    %v88 = vld [vmem:[#allocation3] sm:$0xff]
    %v89 = vld [vmem:[#allocation3 + $0x8] sm:$0x1]
    %v90 = vld [vmem:[%s3] sm:$0x1]
    %v91 = vld [vmem:[%s5] sm:$0x1]
    %v92 = vld [vmem:[#allocation6] sm:$0xf]
    %v93 = vld [vmem:[#allocation6 + $0x4] sm:$0xf]
    %v94 = vld [vmem:[#allocation6 + $0x8] sm:$0xf]
    %v95 = vld [vmem:[#allocation6 + $0xc] sm:$0xf]
    %v96 = vld [vmem:[#allocation6 + $0x10] sm:$0xf]
    %v97 = vld [vmem:[#allocation6 + $0x14] sm:$0xf]
    %v98 = vld [vmem:[#allocation6 + $0x18] sm:$0xf]
    %v99 = vld [vmem:[#allocation6 + $0x1c] sm:$0xf]
    %v100 = vld [vmem:[#allocation6 + $0x20] sm:$0xf]
    %v101 = vld [vmem:[#allocation6 + $0x24] sm:$0xf]
    %v102 = vld [vmem:[#allocation6 + $0x28] sm:$0xf]
    %v103 = vld [vmem:[#allocation6 + $0x2c] sm:$0xf]
    %v104 = vld [vmem:[#allocation6 + $0x30] sm:$0xf]
    %v105 = vld [vmem:[#allocation6 + $0x34] sm:$0xf]
    %v106 = vld [vmem:[#allocation6 + $0x38] sm:$0xf]
    %v107 = vld [vmem:[#allocation6 + $0x3c] sm:$0xf]
    %v108 = vld [vmem:[%s1] sm:$0xff]
    %v109 = vld [vmem:[%s1 + $0x8] sm:$0xff]
    %v110 = vld [vmem:[%s1 + $0x10] sm:$0xff]
    %v111 = vld [vmem:[%s1 + $0x18] sm:$0xff]
    %v112 = vld [vmem:[%s1 + $0x20] sm:$0xff]
    %v113 = vld [vmem:[%s1 + $0x28] sm:$0xff]
    %v114 = vld [vmem:[%s1 + $0x30] sm:$0xff]
    %v115 = vld [vmem:[%s1 + $0x38] sm:$0xff]
    %v116 = vlaneseq
    %v117 = vshrl.u32 %v116, 7
    %v118 = vadd.s32 %v117, 8
    %v119 = vadd.s32 %v117, 16
    %v120 = vadd.s32 %v117, 24
    %vm121 = vcmp.lt.s32.totalorder %v117, 0
    %v122 = vsub.s32 0, %v117
    %v123 = vsel %vm121, %v122, %v117
    %v124 = vand.u32 %v123, 65535
    %v125 = vshrl.u32 %v123, 16
    %v127 = vmul.u32 %v124, 52429
    %v128 = vmul.u32 %v124, 52428
    %v129 = vmul.u32 %v125, 52429
    %v130 = vmul.u32 %v125, 52428
    %v131 = vshll.u32 %v128, 16
    %v132 = vshrl.u32 %v128, 16
    %v133 = vshll.u32 %v129, 16
    %v134 = vshrl.u32 %v129, 16
    %vm135 = vc.u32 %v127, %v131
    %v136 = vsel %vm135, 1, 0
    %v137 = vadd.s32 %v127, %v131
    %v138 = vadd.s32 %v130, %v136
    %vm139 = vc.u32 %v137, %v133
    %v140 = vsel %vm139, 1, 0
    %v141 = vadd.s32 %v137, %v133
    %v142 = vadd.s32 %v138, %v140
    %v143 = vadd.s32 %v142, %v132
    %v144 = vadd.s32 %v143, %v134
    %v145 = vshrl.u32 %v144, 3
    %v146 = vmul.u32 %v145, 10
    %v147 = vsub.s32 %v123, %v146
    %v148 = vsub.s32 0, %v147
    %v149 = vsel %vm121, %v148, %v147
    %vm150 = vcmp.lt.s32.totalorder %v118, 0
    %v151 = vsub.s32 0, %v118
    %v152 = vsel %vm150, %v151, %v118
    %v153 = vand.u32 %v152, 65535
    %v154 = vshrl.u32 %v152, 16
    %v156 = vmul.u32 %v153, 52429
    %v157 = vmul.u32 %v153, 52428
    %v158 = vmul.u32 %v154, 52429
    %v159 = vmul.u32 %v154, 52428
    %v160 = vshll.u32 %v157, 16
    %v161 = vshrl.u32 %v157, 16
    %v162 = vshll.u32 %v158, 16
    %v163 = vshrl.u32 %v158, 16
    %vm164 = vc.u32 %v156, %v160
    %v165 = vsel %vm164, 1, 0
    %v166 = vadd.s32 %v156, %v160
    %v167 = vadd.s32 %v159, %v165
    %vm168 = vc.u32 %v166, %v162
    %v169 = vsel %vm168, 1, 0
    %v170 = vadd.s32 %v166, %v162
    %v171 = vadd.s32 %v167, %v169
    %v172 = vadd.s32 %v171, %v161
    %v173 = vadd.s32 %v172, %v163
    %v174 = vshrl.u32 %v173, 3
    %v175 = vmul.u32 %v174, 10
    %v176 = vsub.s32 %v152, %v175
    %v177 = vsub.s32 0, %v176
    %v178 = vsel %vm150, %v177, %v176
    %vm179 = vcmp.lt.s32.totalorder %v119, 0
    %v180 = vsub.s32 0, %v119
    %v181 = vsel %vm179, %v180, %v119
    %v182 = vand.u32 %v181, 65535
    %v183 = vshrl.u32 %v181, 16
    %v185 = vmul.u32 %v182, 52429
    %v186 = vmul.u32 %v182, 52428
    %v187 = vmul.u32 %v183, 52429
    %v188 = vmul.u32 %v183, 52428
    %v189 = vshll.u32 %v186, 16
    %v190 = vshrl.u32 %v186, 16
    %v191 = vshll.u32 %v187, 16
    %v192 = vshrl.u32 %v187, 16
    %vm193 = vc.u32 %v185, %v189
    %v194 = vsel %vm193, 1, 0
    %v195 = vadd.s32 %v185, %v189
    %v196 = vadd.s32 %v188, %v194
    %vm197 = vc.u32 %v195, %v191
    %v198 = vsel %vm197, 1, 0
    %v199 = vadd.s32 %v195, %v191
    %v200 = vadd.s32 %v196, %v198
    %v201 = vadd.s32 %v200, %v190
    %v202 = vadd.s32 %v201, %v192
    %v203 = vshrl.u32 %v202, 3
    %v204 = vmul.u32 %v203, 10
    %v205 = vsub.s32 %v181, %v204
    %v206 = vsub.s32 0, %v205
    %v207 = vsel %vm179, %v206, %v205
    %vm208 = vcmp.lt.s32.totalorder %v120, 0
    %v209 = vsub.s32 0, %v120
    %v210 = vsel %vm208, %v209, %v120
    %v211 = vand.u32 %v210, 65535
    %v212 = vshrl.u32 %v210, 16
    %v214 = vmul.u32 %v211, 52429
    %v215 = vmul.u32 %v211, 52428
    %v216 = vmul.u32 %v212, 52429
    %v217 = vmul.u32 %v212, 52428
    %v218 = vshll.u32 %v215, 16
    %v219 = vshrl.u32 %v215, 16
    %v220 = vshll.u32 %v216, 16
    %v221 = vshrl.u32 %v216, 16
    %vm222 = vc.u32 %v214, %v218
    %v223 = vsel %vm222, 1, 0
    %v224 = vadd.s32 %v214, %v218
    %v225 = vadd.s32 %v217, %v223
    %vm226 = vc.u32 %v224, %v220
    %v227 = vsel %vm226, 1, 0
    %v228 = vadd.s32 %v224, %v220
    %v229 = vadd.s32 %v225, %v227
    %v230 = vadd.s32 %v229, %v219
    %v231 = vadd.s32 %v230, %v221
    %v232 = vshrl.u32 %v231, 3
    %v233 = vmul.u32 %v232, 10
    %v234 = vsub.s32 %v210, %v233
    %v235 = vsub.s32 0, %v234
    %v236 = vsel %vm208, %v235, %v234
    %vm237 = vcmp.ne.s32.totalorder %v149, 0
    %vm238 = vcmp.ne.s32.totalorder %v178, 0
    %vm239 = vcmp.ne.s32.totalorder %v207, 0
    %vm240 = vcmp.ne.s32.totalorder %v236, 0
    %vm241 = vcmp.lt.s32.totalorder %v149, 0
    %vm242 = vcmp.lt.s32.totalorder %v178, 0
    %vm243 = vcmp.lt.s32.totalorder %v207, 0
    %vm244 = vcmp.lt.s32.totalorder %v236, 0
    %vm245 = vmand %vm241, %vm237
    %vm246 = vmand %vm242, %vm238
    %vm247 = vmand %vm243, %vm239
    %vm248 = vmand %vm244, %vm240
    %v249 = vadd.s32 %v149, 10
    %v250 = vadd.s32 %v178, 10
    %v251 = vadd.s32 %v207, 10
    %v252 = vadd.s32 %v236, 10
    %v253 = vsel %vm245, %v249, %v149
    %v254 = vsel %vm246, %v250, %v178
    %v255 = vsel %vm247, %v251, %v207
    %v256 = vsel %vm248, %v252, %v236
    %vm257 = vcmp.ge.s32.totalorder %v253, 1
    %vm258 = vcmp.ge.s32.totalorder %v254, 1
    %vm259 = vcmp.ge.s32.totalorder %v255, 1
    %vm260 = vcmp.ge.s32.totalorder %v256, 1
    %vm261 = vcmp.le.s32.totalorder %v253, 8
    %vm262 = vcmp.le.s32.totalorder %v254, 8
    %vm263 = vcmp.le.s32.totalorder %v255, 8
    %vm264 = vcmp.le.s32.totalorder %v256, 8
    %v265 = vld [vmem:[#allocation2 + $0x5] sm:$0xff]
    %v266 = vld [vmem:[#allocation2 + $0xd] sm:$0xff]
    %v267 = vld [vmem:[#allocation2 + $0x15] sm:$0xff]
    %v268 = vld [vmem:[#allocation2 + $0x1d] sm:$0xff]
    %v269 = vld [vmem:[#allocation2 + $0x45] sm:$0xff]
    %v270 = vld [vmem:[#allocation2 + $0x4d] sm:$0xff]
    %v271 = vld [vmem:[#allocation2 + $0x55] sm:$0xff]
    %v272 = vld [vmem:[#allocation2 + $0x5d] sm:$0xff]
    %v273 = vld [vmem:[#allocation2 + $0x6] sm:$0xff]
    %v274 = vld [vmem:[#allocation2 + $0xe] sm:$0xff]
    %v275 = vld [vmem:[#allocation2 + $0x16] sm:$0xff]
    %v276 = vld [vmem:[#allocation2 + $0x1e] sm:$0xff]
    %v277 = vld [vmem:[#allocation2 + $0x46] sm:$0xff]
    %v278 = vld [vmem:[#allocation2 + $0x4e] sm:$0xff]
    %v279 = vld [vmem:[#allocation2 + $0x56] sm:$0xff]
    %v280 = vld [vmem:[#allocation2 + $0x5e] sm:$0xff]
    %v281 = vld [vmem:[#allocation2 + $0x7] sm:$0xff]
    %v282 = vld [vmem:[#allocation2 + $0xf] sm:$0xff]
    %v283 = vld [vmem:[#allocation2 + $0x17] sm:$0xff]
    %v284 = vld [vmem:[#allocation2 + $0x1f] sm:$0xff]
    %v285 = vld [vmem:[#allocation2 + $0x47] sm:$0xff]
    %v286 = vld [vmem:[#allocation2 + $0x4f] sm:$0xff]
    %v287 = vld [vmem:[#allocation2 + $0x57] sm:$0xff]
    %v288 = vld [vmem:[#allocation2 + $0x5f] sm:$0xff]
    %v289 = vsel %vm257, 1, 0
    %v290 = vsel %vm258, 1, 0
    %v291 = vsel %vm259, 1, 0
    %v292 = vsel %vm260, 1, 0
    %vm293 = vcmp.eq.s32.totalorder %v289, 1
    %vm294 = vcmp.eq.s32.totalorder %v290, 1
    %vm295 = vcmp.eq.s32.totalorder %v291, 1
    %vm296 = vcmp.eq.s32.totalorder %v292, 1
    %v297 = vsel %vm293, %v265, 0.0
    %v298 = vsel %vm294, %v266, 0.0
    %v299 = vsel %vm295, %v267, 0.0
    %v300 = vsel %vm296, %v268, 0.0
    %v301 = vsel %vm293, %v269, 0.0
    %v302 = vsel %vm294, %v270, 0.0
    %v303 = vsel %vm295, %v271, 0.0
    %v304 = vsel %vm296, %v272, 0.0
    %v305 = vperm.slane %v88, 0
    %v306 = vmul.f32 %v297, %v305
    %v307 = vmul.f32 %v298, %v305
    %v308 = vmul.f32 %v299, %v305
    %v309 = vmul.f32 %v300, %v305
    %v310 = vmul.f32 %v301, %v305
    %v311 = vmul.f32 %v302, %v305
    %v312 = vmul.f32 %v303, %v305
    %v313 = vmul.f32 %v304, %v305
    %v314 = vadd.f32 %v306, 0.0
    %v315 = vadd.f32 %v307, 0.0
    %v316 = vadd.f32 %v308, 0.0
    %v317 = vadd.f32 %v309, 0.0
    %v318 = vadd.f32 %v310, 0.0
    %v319 = vadd.f32 %v311, 0.0
    %v320 = vadd.f32 %v312, 0.0
    %v321 = vadd.f32 %v313, 0.0
    %v322 = vperm.slane %v88, 1
    %v323 = vmul.f32 %v273, %v322
    %v324 = vmul.f32 %v274, %v322
    %v325 = vmul.f32 %v275, %v322
    %v326 = vmul.f32 %v276, %v322
    %v327 = vmul.f32 %v277, %v322
    %v328 = vmul.f32 %v278, %v322
    %v329 = vmul.f32 %v279, %v322
    %v330 = vmul.f32 %v280, %v322
    %v331 = vadd.f32 %v314, %v323
    %v332 = vadd.f32 %v315, %v324
    %v333 = vadd.f32 %v316, %v325
    %v334 = vadd.f32 %v317, %v326
    %v335 = vadd.f32 %v318, %v327
    %v336 = vadd.f32 %v319, %v328
    %v337 = vadd.f32 %v320, %v329
    %v338 = vadd.f32 %v321, %v330
    %v339 = vsel %vm261, 1, 0
    %v340 = vsel %vm262, 1, 0
    %v341 = vsel %vm263, 1, 0
    %v342 = vsel %vm264, 1, 0
    %vm343 = vcmp.eq.s32.totalorder %v339, 1
    %vm344 = vcmp.eq.s32.totalorder %v340, 1
    %vm345 = vcmp.eq.s32.totalorder %v341, 1
    %vm346 = vcmp.eq.s32.totalorder %v342, 1
    %v347 = vsel %vm343, %v281, 0.0
    %v348 = vsel %vm344, %v282, 0.0
    %v349 = vsel %vm345, %v283, 0.0
    %v350 = vsel %vm346, %v284, 0.0
    %v351 = vsel %vm343, %v285, 0.0
    %v352 = vsel %vm344, %v286, 0.0
    %v353 = vsel %vm345, %v287, 0.0
    %v354 = vsel %vm346, %v288, 0.0
    %v355 = vperm.slane %v88, 2
    %v356 = vmul.f32 %v347, %v355
    %v357 = vmul.f32 %v348, %v355
    %v358 = vmul.f32 %v349, %v355
    %v359 = vmul.f32 %v350, %v355
    %v360 = vmul.f32 %v351, %v355
    %v361 = vmul.f32 %v352, %v355
    %v362 = vmul.f32 %v353, %v355
    %v363 = vmul.f32 %v354, %v355
    %v364 = vadd.f32 %v331, %v356
    %v365 = vadd.f32 %v332, %v357
    %v366 = vadd.f32 %v333, %v358
    %v367 = vadd.f32 %v334, %v359
    %v368 = vadd.f32 %v335, %v360
    %v369 = vadd.f32 %v336, %v361
    %v370 = vadd.f32 %v337, %v362
    %v371 = vadd.f32 %v338, %v363
    %v372 = vld [vmem:[#allocation2 + $0x27] sm:$0xff]
    %v373 = vld [vmem:[#allocation2 + $0x67] sm:$0xff]
    %v374 = vld [vmem:[#allocation2 + $0x10] sm:$0xff]
    %v375 = vld [vmem:[#allocation2 + $0x18] sm:$0xff]
    %v376 = vld [vmem:[#allocation2 + $0x20] sm:$0xff]
    %v377 = vld [vmem:[#allocation2 + $0x28] sm:$0xff]
    %v378 = vld [vmem:[#allocation2 + $0x50] sm:$0xff]
    %v379 = vld [vmem:[#allocation2 + $0x58] sm:$0xff]
    %v380 = vld [vmem:[#allocation2 + $0x60] sm:$0xff]
    %v381 = vld [vmem:[#allocation2 + $0x68] sm:$0xff]
    %v382 = vld [vmem:[#allocation2 + $0x11] sm:$0xff]
    %v383 = vld [vmem:[#allocation2 + $0x19] sm:$0xff]
    %v384 = vld [vmem:[#allocation2 + $0x21] sm:$0xff]
    %v385 = vld [vmem:[#allocation2 + $0x29] sm:$0xff]
    %v386 = vld [vmem:[#allocation2 + $0x51] sm:$0xff]
    %v387 = vld [vmem:[#allocation2 + $0x59] sm:$0xff]
    %v388 = vld [vmem:[#allocation2 + $0x61] sm:$0xff]
    %v389 = vld [vmem:[#allocation2 + $0x69] sm:$0xff]
    %v390 = vsel %vm293, %v282, 0.0
    %v391 = vsel %vm294, %v283, 0.0
    %v392 = vsel %vm295, %v284, 0.0
    %v393 = vsel %vm296, %v372, 0.0
    %v394 = vsel %vm293, %v286, 0.0
    %v395 = vsel %vm294, %v287, 0.0
    %v396 = vsel %vm295, %v288, 0.0
    %v397 = vsel %vm296, %v373, 0.0
    %v398 = vperm.slane %v88, 3
    %v399 = vmul.f32 %v390, %v398
    %v400 = vmul.f32 %v391, %v398
    %v401 = vmul.f32 %v392, %v398
    %v402 = vmul.f32 %v393, %v398
    %v403 = vmul.f32 %v394, %v398
    %v404 = vmul.f32 %v395, %v398
    %v405 = vmul.f32 %v396, %v398
    %v406 = vmul.f32 %v397, %v398
    %v407 = vadd.f32 %v364, %v399
    %v408 = vadd.f32 %v365, %v400
    %v409 = vadd.f32 %v366, %v401
    %v410 = vadd.f32 %v367, %v402
    %v411 = vadd.f32 %v368, %v403
    %v412 = vadd.f32 %v369, %v404
    %v413 = vadd.f32 %v370, %v405
    %v414 = vadd.f32 %v371, %v406
    %v415 = vperm.slane %v88, 4
    %v416 = vmul.f32 %v374, %v415
    %v417 = vmul.f32 %v375, %v415
    %v418 = vmul.f32 %v376, %v415
    %v419 = vmul.f32 %v377, %v415
    %v420 = vmul.f32 %v378, %v415
    %v421 = vmul.f32 %v379, %v415
    %v422 = vmul.f32 %v380, %v415
    %v423 = vmul.f32 %v381, %v415
    %v424 = vadd.f32 %v407, %v416
    %v425 = vadd.f32 %v408, %v417
    %v426 = vadd.f32 %v409, %v418
    %v427 = vadd.f32 %v410, %v419
    %v428 = vadd.f32 %v411, %v420
    %v429 = vadd.f32 %v412, %v421
    %v430 = vadd.f32 %v413, %v422
    %v431 = vadd.f32 %v414, %v423
    %v432 = vsel %vm343, %v382, 0.0
    %v433 = vsel %vm344, %v383, 0.0
    %v434 = vsel %vm345, %v384, 0.0
    %v435 = vsel %vm346, %v385, 0.0
    %v436 = vsel %vm343, %v386, 0.0
    %v437 = vsel %vm344, %v387, 0.0
    %v438 = vsel %vm345, %v388, 0.0
    %v439 = vsel %vm346, %v389, 0.0
    %v440 = vperm.slane %v88, 5
    %v441 = vmul.f32 %v432, %v440
    %v442 = vmul.f32 %v433, %v440
    %v443 = vmul.f32 %v434, %v440
    %v444 = vmul.f32 %v435, %v440
    %v445 = vmul.f32 %v436, %v440
    %v446 = vmul.f32 %v437, %v440
    %v447 = vmul.f32 %v438, %v440
    %v448 = vmul.f32 %v439, %v440
    %v449 = vadd.f32 %v424, %v441
    %v450 = vadd.f32 %v425, %v442
    %v451 = vadd.f32 %v426, %v443
    %v452 = vadd.f32 %v427, %v444
    %v453 = vadd.f32 %v428, %v445
    %v454 = vadd.f32 %v429, %v446
    %v455 = vadd.f32 %v430, %v447
    %v456 = vadd.f32 %v431, %v448
    %v457 = vld [vmem:[#allocation2 + $0x31] sm:$0xff]
    %v458 = vld [vmem:[#allocation2 + $0x71] sm:$0xff]
    %v459 = vld [vmem:[#allocation2 + $0x1a] sm:$0xff]
    %v460 = vld [vmem:[#allocation2 + $0x22] sm:$0xff]
    %v461 = vld [vmem:[#allocation2 + $0x2a] sm:$0xff]
    %v462 = vld [vmem:[#allocation2 + $0x32] sm:$0xff]
    %v463 = vld [vmem:[#allocation2 + $0x5a] sm:$0xff]
    %v464 = vld [vmem:[#allocation2 + $0x62] sm:$0xff]
    %v465 = vld [vmem:[#allocation2 + $0x6a] sm:$0xff]
    %v466 = vld [vmem:[#allocation2 + $0x72] sm:$0xff]
    %v467 = vld [vmem:[#allocation2 + $0x1b] sm:$0xff]
    %v468 = vld [vmem:[#allocation2 + $0x23] sm:$0xff]
    %v469 = vld [vmem:[#allocation2 + $0x2b] sm:$0xff]
    %v470 = vld [vmem:[#allocation2 + $0x33] sm:$0xff]
    %v471 = vld [vmem:[#allocation2 + $0x5b] sm:$0xff]
    %v472 = vld [vmem:[#allocation2 + $0x63] sm:$0xff]
    %v473 = vld [vmem:[#allocation2 + $0x6b] sm:$0xff]
    %v474 = vld [vmem:[#allocation2 + $0x73] sm:$0xff]
    %v475 = vsel %vm293, %v383, 0.0
    %v476 = vsel %vm294, %v384, 0.0
    %v477 = vsel %vm295, %v385, 0.0
    %v478 = vsel %vm296, %v457, 0.0
    %v479 = vsel %vm293, %v387, 0.0
    %v480 = vsel %vm294, %v388, 0.0
    %v481 = vsel %vm295, %v389, 0.0
    %v482 = vsel %vm296, %v458, 0.0
    %v483 = vperm.slane %v88, 6
    %v484 = vmul.f32 %v475, %v483
    %v485 = vmul.f32 %v476, %v483
    %v486 = vmul.f32 %v477, %v483
    %v487 = vmul.f32 %v478, %v483
    %v488 = vmul.f32 %v479, %v483
    %v489 = vmul.f32 %v480, %v483
    %v490 = vmul.f32 %v481, %v483
    %v491 = vmul.f32 %v482, %v483
    %v492 = vadd.f32 %v449, %v484
    %v493 = vadd.f32 %v450, %v485
    %v494 = vadd.f32 %v451, %v486
    %v495 = vadd.f32 %v452, %v487
    %v496 = vadd.f32 %v453, %v488
    %v497 = vadd.f32 %v454, %v489
    %v498 = vadd.f32 %v455, %v490
    %v499 = vadd.f32 %v456, %v491
    %v500 = vperm.slane %v88, 7
    %v501 = vmul.f32 %v459, %v500
    %v502 = vmul.f32 %v460, %v500
    %v503 = vmul.f32 %v461, %v500
    %v504 = vmul.f32 %v462, %v500
    %v505 = vmul.f32 %v463, %v500
    %v506 = vmul.f32 %v464, %v500
    %v507 = vmul.f32 %v465, %v500
    %v508 = vmul.f32 %v466, %v500
    %v509 = vadd.f32 %v492, %v501
    %v510 = vadd.f32 %v493, %v502
    %v511 = vadd.f32 %v494, %v503
    %v512 = vadd.f32 %v495, %v504
    %v513 = vadd.f32 %v496, %v505
    %v514 = vadd.f32 %v497, %v506
    %v515 = vadd.f32 %v498, %v507
    %v516 = vadd.f32 %v499, %v508
    %v517 = vsel %vm343, %v467, 0.0
    %v518 = vsel %vm344, %v468, 0.0
    %v519 = vsel %vm345, %v469, 0.0
    %v520 = vsel %vm346, %v470, 0.0
    %v521 = vsel %vm343, %v471, 0.0
    %v522 = vsel %vm344, %v472, 0.0
    %v523 = vsel %vm345, %v473, 0.0
    %v524 = vsel %vm346, %v474, 0.0
    %v525 = vperm.slane %v89, 0
    %v526 = vmul.f32 %v517, %v525
    %v527 = vmul.f32 %v518, %v525
    %v528 = vmul.f32 %v519, %v525
    %v529 = vmul.f32 %v520, %v525
    %v530 = vmul.f32 %v521, %v525
    %v531 = vmul.f32 %v522, %v525
    %v532 = vmul.f32 %v523, %v525
    %v533 = vmul.f32 %v524, %v525
    %v534 = vadd.f32 %v509, %v526
    %v535 = vadd.f32 %v510, %v527
    %v536 = vadd.f32 %v511, %v528
    %v537 = vadd.f32 %v512, %v529
    %v538 = vadd.f32 %v513, %v530
    %v539 = vadd.f32 %v514, %v531
    %v540 = vadd.f32 %v515, %v532
    %v541 = vadd.f32 %v516, %v533
    %v543 = vperm.slane %v90, 0
    %v545 = vadd.f32 %v534, %v543
    %v546 = vadd.f32 %v535, %v543
    %v547 = vadd.f32 %v536, %v543
    %v548 = vadd.f32 %v537, %v543
    %v549 = vadd.f32 %v538, %v543
    %v550 = vadd.f32 %v539, %v543
    %v551 = vadd.f32 %v540, %v543
    %v552 = vadd.f32 %v541, %v543
    %v553 = vmax.f32 %v545, 0.0
    %v554 = vmax.f32 %v546, 0.0
    %v555 = vmax.f32 %v547, 0.0
    %v556 = vmax.f32 %v548, 0.0
    %v557 = vmax.f32 %v549, 0.0
    %v558 = vmax.f32 %v550, 0.0
    %v559 = vmax.f32 %v551, 0.0
    %v560 = vmax.f32 %v552, 0.0
    %v561 = vpack.c.bf16 %v554, %v553
    %v562 = vpack.c.bf16 %v556, %v555
    %v563 = vpack.c.bf16 %v558, %v557
    %v564 = vpack.c.bf16 %v560, %v559
    %v566 = vperm.slane %v91, 0
    %v584 = vunpack.c.l.b16 %v92
    %v585 = vunpack.c.l.b16 %v93
    %v586 = vunpack.c.l.b16 %v94
    %v587 = vunpack.c.l.b16 %v95
    %v588 = vunpack.c.l.b16 %v96
    %v589 = vunpack.c.l.b16 %v97
    %v590 = vunpack.c.l.b16 %v98
    %v591 = vunpack.c.l.b16 %v99
    %v592 = vunpack.c.l.b16 %v100
    %v593 = vunpack.c.l.b16 %v101
    %v594 = vunpack.c.l.b16 %v102
    %v595 = vunpack.c.l.b16 %v103
    %v596 = vunpack.c.l.b16 %v104
    %v597 = vunpack.c.l.b16 %v105
    %v598 = vunpack.c.l.b16 %v106
    %v599 = vunpack.c.l.b16 %v107
    %v600 = vpack.c.b16 %v585, %v584
    %v601 = vpack.c.b16 %v587, %v586
    %v602 = vpack.c.b16 %v589, %v588
    %v603 = vpack.c.b16 %v591, %v590
    %v604 = vpack.c.b16 %v593, %v592
    %v605 = vpack.c.b16 %v595, %v594
    %v606 = vpack.c.b16 %v597, %v596
    %v607 = vpack.c.b16 %v599, %v598
    %616 = vmatpush.bf16.msra.mxu0 %v607
    %617 = vmatpush.bf16.msra.mxu0 %v606
    %618 = vmatpush.bf16.msra.mxu0 %v605
    %619 = vmatpush.bf16.msra.mxu0 %v604
    %620 = vmatpush.bf16.msra.mxu0 %v603
    %621 = vmatpush.bf16.msra.mxu0 %v602
    %622 = vmatpush.bf16.msra.mxu0 %v601
    %623 = vmatpush.bf16.msra.mxu0 %v600
    %624 = vmatmul.bf16.gmra.mxu0 %v561
    %v625 = vpop.f32.mrf.mxu0
    %v626 = vadd.f32 %v566, %v625
    %v627 = vpop.f32.mrf.mxu0
    %v628 = vadd.f32 %v566, %v627
    %629 = vmatmul.bf16.gmra.mxu0 %v562
    %v630 = vpop.f32.mrf.mxu0
    %v631 = vadd.f32 %v566, %v630
    %v632 = vpop.f32.mrf.mxu0
    %v633 = vadd.f32 %v566, %v632
    %634 = vmatmul.bf16.gmra.mxu0 %v563
    %v635 = vpop.f32.mrf.mxu0
    %v636 = vadd.f32 %v566, %v635
    %v637 = vpop.f32.mrf.mxu0
    %v638 = vadd.f32 %v566, %v637
    %639 = vmatmul.bf16.gmra.mxu0 %v564
    %v640 = vpop.f32.mrf.mxu0
    %v641 = vadd.f32 %v566, %v640
    %v642 = vpop.f32.mrf.mxu0
    %v643 = vadd.f32 %v566, %v642
    %644 = vdwg.mxu0
    %v645 = vmax.f32 %v626, 0.0
    %v646 = vmax.f32 %v628, 0.0
    %v647 = vmax.f32 %v631, 0.0
    %v648 = vmax.f32 %v633, 0.0
    %v649 = vmax.f32 %v636, 0.0
    %v650 = vmax.f32 %v638, 0.0
    %v651 = vmax.f32 %v641, 0.0
    %v652 = vmax.f32 %v643, 0.0
    %v653 = vld [vmem:[#allocation8] sm:$0xff]
    %v654 = vld [vmem:[#allocation8 + $0x8] sm:$0xff]
    %v655 = vld [vmem:[#allocation8 + $0x10] sm:$0xff]
    %v656 = vld [vmem:[#allocation8 + $0x18] sm:$0xff]
    %v657 = vld [vmem:[#allocation8 + $0x20] sm:$0xff]
    %v658 = vld [vmem:[#allocation8 + $0x28] sm:$0xff]
    %v659 = vld [vmem:[#allocation8 + $0x30] sm:$0xff]
    %v660 = vld [vmem:[#allocation8 + $0x38] sm:$0xff]
    %662 = vset.pattern.permute.xlu0 0
    %663 = vperm.xlu0 %662, %v108
    %v664 = vpop.permute.xlu0 %663
    %667 = vset.pattern.permute.xlu0 0
    %668 = vperm.xlu0 %667, %v109
    %v669 = vpop.permute.xlu0 %668
    %672 = vset.pattern.permute.xlu0 0
    %673 = vperm.xlu0 %672, %v110
    %v674 = vpop.permute.xlu0 %673
    %677 = vset.pattern.permute.xlu0 0
    %678 = vperm.xlu0 %677, %v111
    %v679 = vpop.permute.xlu0 %678
    %682 = vset.pattern.permute.xlu0 0
    %683 = vperm.xlu0 %682, %v112
    %v684 = vpop.permute.xlu0 %683
    %687 = vset.pattern.permute.xlu0 0
    %688 = vperm.xlu0 %687, %v113
    %v689 = vpop.permute.xlu0 %688
    %692 = vset.pattern.permute.xlu0 0
    %693 = vperm.xlu0 %692, %v114
    %v694 = vpop.permute.xlu0 %693
    %697 = vset.pattern.permute.xlu0 0
    %698 = vperm.xlu0 %697, %v115
    %v699 = vpop.permute.xlu0 %698
    %v701 = vmul.f32 %v664, %v645
    %v702 = vmul.f32 %v669, %v646
    %v703 = vmul.f32 %v674, %v647
    %v704 = vmul.f32 %v679, %v648
    %v705 = vmul.f32 %v684, %v649
    %v706 = vmul.f32 %v689, %v650
    %v707 = vmul.f32 %v694, %v651
    %v708 = vmul.f32 %v699, %v652
    %v709 = vadd.f32 %v653, %v701
    %v710 = vadd.f32 %v654, %v702
    %v711 = vadd.f32 %v655, %v703
    %v712 = vadd.f32 %v656, %v704
    %v713 = vadd.f32 %v657, %v705
    %v714 = vadd.f32 %v658, %v706
    %v715 = vadd.f32 %v659, %v707
    %v716 = vadd.f32 %v660, %v708
    %717 = vst [vmem:[#allocation8] sm:$0xff] %v709
    %718 = vst [vmem:[#allocation8 + $0x8] sm:$0xff] %v710
    %719 = vst [vmem:[#allocation8 + $0x10] sm:$0xff] %v711
    %720 = vst [vmem:[#allocation8 + $0x18] sm:$0xff] %v712
    %721 = vst [vmem:[#allocation8 + $0x20] sm:$0xff] %v713
    %722 = vst [vmem:[#allocation8 + $0x28] sm:$0xff] %v714
    %723 = vst [vmem:[#allocation8 + $0x30] sm:$0xff] %v715
    %724 = vst [vmem:[#allocation8 + $0x38] sm:$0xff] %v716
    %vm725 = vcmp.lt.s32.totalorder %v117, 0
    %v726 = vsub.s32 0, %v117
    %v727 = vsel %vm725, %v726, %v117
    %v728 = vshrl.u32 %v727, 1
    %v729 = vand.u32 %v727, 1
    %v730 = vsub.s32 0, %v729
    %v731 = vsel %vm725, %v730, %v729
    %vm732 = vcmp.lt.s32.totalorder %v118, 0
    %v733 = vsub.s32 0, %v118
    %v734 = vsel %vm732, %v733, %v118
    %v735 = vshrl.u32 %v734, 1
    %v736 = vand.u32 %v734, 1
    %v737 = vsub.s32 0, %v736
    %v738 = vsel %vm732, %v737, %v736
    %vm739 = vcmp.lt.s32.totalorder %v119, 0
    %v740 = vsub.s32 0, %v119
    %v741 = vsel %vm739, %v740, %v119
    %v742 = vshrl.u32 %v741, 1
    %v743 = vand.u32 %v741, 1
    %v744 = vsub.s32 0, %v743
    %v745 = vsel %vm739, %v744, %v743
    %vm746 = vcmp.lt.s32.totalorder %v120, 0
    %v747 = vsub.s32 0, %v120
    %v748 = vsel %vm746, %v747, %v120
    %v749 = vshrl.u32 %v748, 1
    %v750 = vand.u32 %v748, 1
    %v751 = vsub.s32 0, %v750
    %v752 = vsel %vm746, %v751, %v750
    %vm753 = vcmp.ne.s32.totalorder %v731, 0
    %vm754 = vcmp.ne.s32.totalorder %v738, 0
    %vm755 = vcmp.ne.s32.totalorder %v745, 0
    %vm756 = vcmp.ne.s32.totalorder %v752, 0
    %vm757 = vcmp.lt.s32.totalorder %v731, 0
    %vm758 = vcmp.lt.s32.totalorder %v738, 0
    %vm759 = vcmp.lt.s32.totalorder %v745, 0
    %vm760 = vcmp.lt.s32.totalorder %v752, 0
    %vm761 = vmand %vm757, %vm753
    %vm762 = vmand %vm758, %vm754
    %vm763 = vmand %vm759, %vm755
    %vm764 = vmand %vm760, %vm756
    %v765 = vadd.s32 %v731, 2
    %v766 = vadd.s32 %v738, 2
    %v767 = vadd.s32 %v745, 2
    %v768 = vadd.s32 %v752, 2
    %v769 = vsel %vm761, %v765, %v731
    %v770 = vsel %vm762, %v766, %v738
    %v771 = vsel %vm763, %v767, %v745
    %v772 = vsel %vm764, %v768, %v752
    %vm773 = vcmp.ge.s32.totalorder %v769, 1
    %vm774 = vcmp.ge.s32.totalorder %v770, 1
    %vm775 = vcmp.ge.s32.totalorder %v771, 1
    %vm776 = vcmp.ge.s32.totalorder %v772, 1
    %vm777 = vcmp.le.s32.totalorder %v769, 0
    %vm778 = vcmp.le.s32.totalorder %v770, 0
    %vm779 = vcmp.le.s32.totalorder %v771, 0
    %vm780 = vcmp.le.s32.totalorder %v772, 0
    %v781 = vld [vmem:[#allocation2 + $0xd] sm:$0xff]
    %v782 = vld [vmem:[#allocation2 + $0x15] sm:$0xff]
    %v783 = vld [vmem:[#allocation2 + $0x1d] sm:$0xff]
    %v784 = vld [vmem:[#allocation2 + $0x25] sm:$0xff]
    %v785 = vld [vmem:[#allocation2 + $0x4d] sm:$0xff]
    %v786 = vld [vmem:[#allocation2 + $0x55] sm:$0xff]
    %v787 = vld [vmem:[#allocation2 + $0x5d] sm:$0xff]
    %v788 = vld [vmem:[#allocation2 + $0x65] sm:$0xff]
    %v789 = vld [vmem:[#allocation2 + $0xe] sm:$0xff]
    %v790 = vld [vmem:[#allocation2 + $0x16] sm:$0xff]
    %v791 = vld [vmem:[#allocation2 + $0x1e] sm:$0xff]
    %v792 = vld [vmem:[#allocation2 + $0x26] sm:$0xff]
    %v793 = vld [vmem:[#allocation2 + $0x4e] sm:$0xff]
    %v794 = vld [vmem:[#allocation2 + $0x56] sm:$0xff]
    %v795 = vld [vmem:[#allocation2 + $0x5e] sm:$0xff]
    %v796 = vld [vmem:[#allocation2 + $0x66] sm:$0xff]
    %v797 = vld [vmem:[#allocation2 + $0xf] sm:$0xff]
    %v798 = vld [vmem:[#allocation2 + $0x17] sm:$0xff]
    %v799 = vld [vmem:[#allocation2 + $0x1f] sm:$0xff]
    %v800 = vld [vmem:[#allocation2 + $0x27] sm:$0xff]
    %v801 = vld [vmem:[#allocation2 + $0x4f] sm:$0xff]
    %v802 = vld [vmem:[#allocation2 + $0x57] sm:$0xff]
    %v803 = vld [vmem:[#allocation2 + $0x5f] sm:$0xff]
    %v804 = vld [vmem:[#allocation2 + $0x67] sm:$0xff]
    %v805 = vsel %vm773, 1, 0
    %v806 = vsel %vm774, 1, 0
    %v807 = vsel %vm775, 1, 0
    %v808 = vsel %vm776, 1, 0
    %vm809 = vcmp.eq.s32.totalorder %v805, 1
    %vm810 = vcmp.eq.s32.totalorder %v806, 1
    %vm811 = vcmp.eq.s32.totalorder %v807, 1
    %vm812 = vcmp.eq.s32.totalorder %v808, 1
    %v813 = vsel %vm809, %v781, 0.0
    %v814 = vsel %vm810, %v782, 0.0
    %v815 = vsel %vm811, %v783, 0.0
    %v816 = vsel %vm812, %v784, 0.0
    %v817 = vsel %vm809, %v785, 0.0
    %v818 = vsel %vm810, %v786, 0.0
    %v819 = vsel %vm811, %v787, 0.0
    %v820 = vsel %vm812, %v788, 0.0
    %v821 = vmul.f32 %v813, %v305
    %v822 = vmul.f32 %v814, %v305
    %v823 = vmul.f32 %v815, %v305
    %v824 = vmul.f32 %v816, %v305
    %v825 = vmul.f32 %v817, %v305
    %v826 = vmul.f32 %v818, %v305
    %v827 = vmul.f32 %v819, %v305
    %v828 = vmul.f32 %v820, %v305
    %v829 = vadd.f32 %v821, 0.0
    %v830 = vadd.f32 %v822, 0.0
    %v831 = vadd.f32 %v823, 0.0
    %v832 = vadd.f32 %v824, 0.0
    %v833 = vadd.f32 %v825, 0.0
    %v834 = vadd.f32 %v826, 0.0
    %v835 = vadd.f32 %v827, 0.0
    %v836 = vadd.f32 %v828, 0.0
    %v837 = vmul.f32 %v789, %v322
    %v838 = vmul.f32 %v790, %v322
    %v839 = vmul.f32 %v791, %v322
    %v840 = vmul.f32 %v792, %v322
    %v841 = vmul.f32 %v793, %v322
    %v842 = vmul.f32 %v794, %v322
    %v843 = vmul.f32 %v795, %v322
    %v844 = vmul.f32 %v796, %v322
    %v845 = vadd.f32 %v829, %v837
    %v846 = vadd.f32 %v830, %v838
    %v847 = vadd.f32 %v831, %v839
    %v848 = vadd.f32 %v832, %v840
    %v849 = vadd.f32 %v833, %v841
    %v850 = vadd.f32 %v834, %v842
    %v851 = vadd.f32 %v835, %v843
    %v852 = vadd.f32 %v836, %v844
    %v853 = vsel %vm777, 1, 0
    %v854 = vsel %vm778, 1, 0
    %v855 = vsel %vm779, 1, 0
    %v856 = vsel %vm780, 1, 0
    %vm857 = vcmp.eq.s32.totalorder %v853, 1
    %vm858 = vcmp.eq.s32.totalorder %v854, 1
    %vm859 = vcmp.eq.s32.totalorder %v855, 1
    %vm860 = vcmp.eq.s32.totalorder %v856, 1
    %v861 = vsel %vm857, %v797, 0.0
    %v862 = vsel %vm858, %v798, 0.0
    %v863 = vsel %vm859, %v799, 0.0
    %v864 = vsel %vm860, %v800, 0.0
    %v865 = vsel %vm857, %v801, 0.0
    %v866 = vsel %vm858, %v802, 0.0
    %v867 = vsel %vm859, %v803, 0.0
    %v868 = vsel %vm860, %v804, 0.0
    %v869 = vmul.f32 %v861, %v355
    %v870 = vmul.f32 %v862, %v355
    %v871 = vmul.f32 %v863, %v355
    %v872 = vmul.f32 %v864, %v355
    %v873 = vmul.f32 %v865, %v355
    %v874 = vmul.f32 %v866, %v355
    %v875 = vmul.f32 %v867, %v355
    %v876 = vmul.f32 %v868, %v355
    %v877 = vadd.f32 %v845, %v869
    %v878 = vadd.f32 %v846, %v870
    %v879 = vadd.f32 %v847, %v871
    %v880 = vadd.f32 %v848, %v872
    %v881 = vadd.f32 %v849, %v873
    %v882 = vadd.f32 %v850, %v874
    %v883 = vadd.f32 %v851, %v875
    %v884 = vadd.f32 %v852, %v876
    %v885 = vld [vmem:[#allocation2 + $0x10] sm:$0xff]
    %v886 = vld [vmem:[#allocation2 + $0x18] sm:$0xff]
    %v887 = vld [vmem:[#allocation2 + $0x20] sm:$0xff]
    %v888 = vld [vmem:[#allocation2 + $0x28] sm:$0xff]
    %v889 = vld [vmem:[#allocation2 + $0x50] sm:$0xff]
    %v890 = vld [vmem:[#allocation2 + $0x58] sm:$0xff]
    %v891 = vld [vmem:[#allocation2 + $0x60] sm:$0xff]
    %v892 = vld [vmem:[#allocation2 + $0x68] sm:$0xff]
    %v893 = vld [vmem:[#allocation2 + $0x11] sm:$0xff]
    %v894 = vld [vmem:[#allocation2 + $0x19] sm:$0xff]
    %v895 = vld [vmem:[#allocation2 + $0x21] sm:$0xff]
    %v896 = vld [vmem:[#allocation2 + $0x29] sm:$0xff]
    %v897 = vld [vmem:[#allocation2 + $0x51] sm:$0xff]
    %v898 = vld [vmem:[#allocation2 + $0x59] sm:$0xff]
    %v899 = vld [vmem:[#allocation2 + $0x61] sm:$0xff]
    %v900 = vld [vmem:[#allocation2 + $0x69] sm:$0xff]
    %v901 = vsel %vm809, %v797, 0.0
    %v902 = vsel %vm810, %v798, 0.0
    %v903 = vsel %vm811, %v799, 0.0
    %v904 = vsel %vm812, %v800, 0.0
    %v905 = vsel %vm809, %v801, 0.0
    %v906 = vsel %vm810, %v802, 0.0
    %v907 = vsel %vm811, %v803, 0.0
    %v908 = vsel %vm812, %v804, 0.0
    %v909 = vmul.f32 %v901, %v398
    %v910 = vmul.f32 %v902, %v398
    %v911 = vmul.f32 %v903, %v398
    %v912 = vmul.f32 %v904, %v398
    %v913 = vmul.f32 %v905, %v398
    %v914 = vmul.f32 %v906, %v398
    %v915 = vmul.f32 %v907, %v398
    %v916 = vmul.f32 %v908, %v398
    %v917 = vadd.f32 %v877, %v909
    %v918 = vadd.f32 %v878, %v910
    %v919 = vadd.f32 %v879, %v911
    %v920 = vadd.f32 %v880, %v912
    %v921 = vadd.f32 %v881, %v913
    %v922 = vadd.f32 %v882, %v914
    %v923 = vadd.f32 %v883, %v915
    %v924 = vadd.f32 %v884, %v916
    %v925 = vmul.f32 %v885, %v415
    %v926 = vmul.f32 %v886, %v415
    %v927 = vmul.f32 %v887, %v415
    %v928 = vmul.f32 %v888, %v415
    %v929 = vmul.f32 %v889, %v415
    %v930 = vmul.f32 %v890, %v415
    %v931 = vmul.f32 %v891, %v415
    %v932 = vmul.f32 %v892, %v415
    %v933 = vadd.f32 %v917, %v925
    %v934 = vadd.f32 %v918, %v926
    %v935 = vadd.f32 %v919, %v927
    %v936 = vadd.f32 %v920, %v928
    %v937 = vadd.f32 %v921, %v929
    %v938 = vadd.f32 %v922, %v930
    %v939 = vadd.f32 %v923, %v931
    %v940 = vadd.f32 %v924, %v932
    %v941 = vsel %vm857, %v893, 0.0
    %v942 = vsel %vm858, %v894, 0.0
    %v943 = vsel %vm859, %v895, 0.0
    %v944 = vsel %vm860, %v896, 0.0
    %v945 = vsel %vm857, %v897, 0.0
    %v946 = vsel %vm858, %v898, 0.0
    %v947 = vsel %vm859, %v899, 0.0
    %v948 = vsel %vm860, %v900, 0.0
    %v949 = vmul.f32 %v941, %v440
    %v950 = vmul.f32 %v942, %v440
    %v951 = vmul.f32 %v943, %v440
    %v952 = vmul.f32 %v944, %v440
    %v953 = vmul.f32 %v945, %v440
    %v954 = vmul.f32 %v946, %v440
    %v955 = vmul.f32 %v947, %v440
    %v956 = vmul.f32 %v948, %v440
    %v957 = vadd.f32 %v933, %v949
    %v958 = vadd.f32 %v934, %v950
    %v959 = vadd.f32 %v935, %v951
    %v960 = vadd.f32 %v936, %v952
    %v961 = vadd.f32 %v937, %v953
    %v962 = vadd.f32 %v938, %v954
    %v963 = vadd.f32 %v939, %v955
    %v964 = vadd.f32 %v940, %v956
    %v965 = vld [vmem:[#allocation2 + $0x12] sm:$0xff]
    %v966 = vld [vmem:[#allocation2 + $0x1a] sm:$0xff]
    %v967 = vld [vmem:[#allocation2 + $0x22] sm:$0xff]
    %v968 = vld [vmem:[#allocation2 + $0x2a] sm:$0xff]
    %v969 = vld [vmem:[#allocation2 + $0x52] sm:$0xff]
    %v970 = vld [vmem:[#allocation2 + $0x5a] sm:$0xff]
    %v971 = vld [vmem:[#allocation2 + $0x62] sm:$0xff]
    %v972 = vld [vmem:[#allocation2 + $0x6a] sm:$0xff]
    %v973 = vld [vmem:[#allocation2 + $0x13] sm:$0xff]
    %v974 = vld [vmem:[#allocation2 + $0x1b] sm:$0xff]
    %v975 = vld [vmem:[#allocation2 + $0x23] sm:$0xff]
    %v976 = vld [vmem:[#allocation2 + $0x2b] sm:$0xff]
    %v977 = vld [vmem:[#allocation2 + $0x53] sm:$0xff]
    %v978 = vld [vmem:[#allocation2 + $0x5b] sm:$0xff]
    %v979 = vld [vmem:[#allocation2 + $0x63] sm:$0xff]
    %v980 = vld [vmem:[#allocation2 + $0x6b] sm:$0xff]
    %v981 = vsel %vm809, %v893, 0.0
    %v982 = vsel %vm810, %v894, 0.0
    %v983 = vsel %vm811, %v895, 0.0
    %v984 = vsel %vm812, %v896, 0.0
    %v985 = vsel %vm809, %v897, 0.0
    %v986 = vsel %vm810, %v898, 0.0
    %v987 = vsel %vm811, %v899, 0.0
    %v988 = vsel %vm812, %v900, 0.0
    %v989 = vmul.f32 %v981, %v483
    %v990 = vmul.f32 %v982, %v483
    %v991 = vmul.f32 %v983, %v483
    %v992 = vmul.f32 %v984, %v483
    %v993 = vmul.f32 %v985, %v483
    %v994 = vmul.f32 %v986, %v483
    %v995 = vmul.f32 %v987, %v483
    %v996 = vmul.f32 %v988, %v483
    %v997 = vadd.f32 %v957, %v989
    %v998 = vadd.f32 %v958, %v990
    %v999 = vadd.f32 %v959, %v991
    %v1000 = vadd.f32 %v960, %v992
    %v1001 = vadd.f32 %v961, %v993
    %v1002 = vadd.f32 %v962, %v994
    %v1003 = vadd.f32 %v963, %v995
    %v1004 = vadd.f32 %v964, %v996
    %v1005 = vmul.f32 %v965, %v500
    %v1006 = vmul.f32 %v966, %v500
    %v1007 = vmul.f32 %v967, %v500
    %v1008 = vmul.f32 %v968, %v500
    %v1009 = vmul.f32 %v969, %v500
    %v1010 = vmul.f32 %v970, %v500
    %v1011 = vmul.f32 %v971, %v500
    %v1012 = vmul.f32 %v972, %v500
    %v1013 = vadd.f32 %v997, %v1005
    %v1014 = vadd.f32 %v998, %v1006
    %v1015 = vadd.f32 %v999, %v1007
    %v1016 = vadd.f32 %v1000, %v1008
    %v1017 = vadd.f32 %v1001, %v1009
    %v1018 = vadd.f32 %v1002, %v1010
    %v1019 = vadd.f32 %v1003, %v1011
    %v1020 = vadd.f32 %v1004, %v1012
    %v1021 = vsel %vm857, %v973, 0.0
    %v1022 = vsel %vm858, %v974, 0.0
    %v1023 = vsel %vm859, %v975, 0.0
    %v1024 = vsel %vm860, %v976, 0.0
    %v1025 = vsel %vm857, %v977, 0.0
    %v1026 = vsel %vm858, %v978, 0.0
    %v1027 = vsel %vm859, %v979, 0.0
    %v1028 = vsel %vm860, %v980, 0.0
    %v1029 = vmul.f32 %v1021, %v525
    %v1030 = vmul.f32 %v1022, %v525
    %v1031 = vmul.f32 %v1023, %v525
    %v1032 = vmul.f32 %v1024, %v525
    %v1033 = vmul.f32 %v1025, %v525
    %v1034 = vmul.f32 %v1026, %v525
    %v1035 = vmul.f32 %v1027, %v525
    %v1036 = vmul.f32 %v1028, %v525
    %v1037 = vadd.f32 %v1013, %v1029
    %v1038 = vadd.f32 %v1014, %v1030
    %v1039 = vadd.f32 %v1015, %v1031
    %v1040 = vadd.f32 %v1016, %v1032
    %v1041 = vadd.f32 %v1017, %v1033
    %v1042 = vadd.f32 %v1018, %v1034
    %v1043 = vadd.f32 %v1019, %v1035
    %v1044 = vadd.f32 %v1020, %v1036
    %v1045 = vadd.f32 %v1037, %v543
    %v1046 = vadd.f32 %v1038, %v543
    %v1047 = vadd.f32 %v1039, %v543
    %v1048 = vadd.f32 %v1040, %v543
    %v1049 = vadd.f32 %v1041, %v543
    %v1050 = vadd.f32 %v1042, %v543
    %v1051 = vadd.f32 %v1043, %v543
    %v1052 = vadd.f32 %v1044, %v543
    %v1053 = vmax.f32 %v1045, 0.0
    %v1054 = vmax.f32 %v1046, 0.0
    %v1055 = vmax.f32 %v1047, 0.0
    %v1056 = vmax.f32 %v1048, 0.0
    %v1057 = vmax.f32 %v1049, 0.0
    %v1058 = vmax.f32 %v1050, 0.0
    %v1059 = vmax.f32 %v1051, 0.0
    %v1060 = vmax.f32 %v1052, 0.0
    %v1061 = vpack.c.bf16 %v1054, %v1053
    %v1062 = vpack.c.bf16 %v1056, %v1055
    %v1063 = vpack.c.bf16 %v1058, %v1057
    %v1064 = vpack.c.bf16 %v1060, %v1059
    %1065 = vmatpush.bf16.msra.mxu0 %v607
    %1066 = vmatpush.bf16.msra.mxu0 %v606
    %1067 = vmatpush.bf16.msra.mxu0 %v605
    %1068 = vmatpush.bf16.msra.mxu0 %v604
    %1069 = vmatpush.bf16.msra.mxu0 %v603
    %1070 = vmatpush.bf16.msra.mxu0 %v602
    %1071 = vmatpush.bf16.msra.mxu0 %v601
    %1072 = vmatpush.bf16.msra.mxu0 %v600
    %1073 = vmatmul.bf16.gmra.mxu0 %v1061
    %v1074 = vpop.f32.mrf.mxu0
    %v1075 = vadd.f32 %v566, %v1074
    %v1076 = vpop.f32.mrf.mxu0
    %v1077 = vadd.f32 %v566, %v1076
    %1078 = vmatmul.bf16.gmra.mxu0 %v1062
    %v1079 = vpop.f32.mrf.mxu0
    %v1080 = vadd.f32 %v566, %v1079
    %v1081 = vpop.f32.mrf.mxu0
    %v1082 = vadd.f32 %v566, %v1081
    %1083 = vmatmul.bf16.gmra.mxu0 %v1063
    %v1084 = vpop.f32.mrf.mxu0
    %v1085 = vadd.f32 %v566, %v1084
    %v1086 = vpop.f32.mrf.mxu0
    %v1087 = vadd.f32 %v566, %v1086
    %1088 = vmatmul.bf16.gmra.mxu0 %v1064
    %v1089 = vpop.f32.mrf.mxu0
    %v1090 = vadd.f32 %v566, %v1089
    %v1091 = vpop.f32.mrf.mxu0
    %v1092 = vadd.f32 %v566, %v1091
    %1093 = vdwg.mxu0
    %v1094 = vmax.f32 %v1075, 0.0
    %v1095 = vmax.f32 %v1077, 0.0
    %v1096 = vmax.f32 %v1080, 0.0
    %v1097 = vmax.f32 %v1082, 0.0
    %v1098 = vmax.f32 %v1085, 0.0
    %v1099 = vmax.f32 %v1087, 0.0
    %v1100 = vmax.f32 %v1090, 0.0
    %v1101 = vmax.f32 %v1092, 0.0
    %v1102 = vld [vmem:[#allocation8] sm:$0xff]
    %v1103 = vld [vmem:[#allocation8 + $0x8] sm:$0xff]
    %v1104 = vld [vmem:[#allocation8 + $0x10] sm:$0xff]
    %v1105 = vld [vmem:[#allocation8 + $0x18] sm:$0xff]
    %v1106 = vld [vmem:[#allocation8 + $0x20] sm:$0xff]
    %v1107 = vld [vmem:[#allocation8 + $0x28] sm:$0xff]
    %v1108 = vld [vmem:[#allocation8 + $0x30] sm:$0xff]
    %v1109 = vld [vmem:[#allocation8 + $0x38] sm:$0xff]
    %1110 = vset.pattern.permute.xlu0 1
    %1111 = vperm.xlu0 %1110, %v108
    %v1112 = vpop.permute.xlu0 %1111
    %1114 = vset.pattern.permute.xlu0 1
    %1115 = vperm.xlu0 %1114, %v109
    %v1116 = vpop.permute.xlu0 %1115
    %1118 = vset.pattern.permute.xlu0 1
    %1119 = vperm.xlu0 %1118, %v110
    %v1120 = vpop.permute.xlu0 %1119
    %1122 = vset.pattern.permute.xlu0 1
    %1123 = vperm.xlu0 %1122, %v111
    %v1124 = vpop.permute.xlu0 %1123
    %1126 = vset.pattern.permute.xlu0 1
    %1127 = vperm.xlu0 %1126, %v112
    %v1128 = vpop.permute.xlu0 %1127
    %1130 = vset.pattern.permute.xlu0 1
    %1131 = vperm.xlu0 %1130, %v113
    %v1132 = vpop.permute.xlu0 %1131
    %1134 = vset.pattern.permute.xlu0 1
    %1135 = vperm.xlu0 %1134, %v114
    %v1136 = vpop.permute.xlu0 %1135
    %1138 = vset.pattern.permute.xlu0 1
    %1139 = vperm.xlu0 %1138, %v115
    %v1140 = vpop.permute.xlu0 %1139
    %v1142 = vmul.f32 %v1112, %v1094
    %v1143 = vmul.f32 %v1116, %v1095
    %v1144 = vmul.f32 %v1120, %v1096
    %v1145 = vmul.f32 %v1124, %v1097
    %v1146 = vmul.f32 %v1128, %v1098
    %v1147 = vmul.f32 %v1132, %v1099
    %v1148 = vmul.f32 %v1136, %v1100
    %v1149 = vmul.f32 %v1140, %v1101
    %v1150 = vadd.f32 %v1102, %v1142
    %v1151 = vadd.f32 %v1103, %v1143
    %v1152 = vadd.f32 %v1104, %v1144
    %v1153 = vadd.f32 %v1105, %v1145
    %v1154 = vadd.f32 %v1106, %v1146
    %v1155 = vadd.f32 %v1107, %v1147
    %v1156 = vadd.f32 %v1108, %v1148
    %v1157 = vadd.f32 %v1109, %v1149
    %1158 = vst [vmem:[#allocation8] sm:$0xff] %v1150
    %1159 = vst [vmem:[#allocation8 + $0x8] sm:$0xff] %v1151
    %1160 = vst [vmem:[#allocation8 + $0x10] sm:$0xff] %v1152
    %1161 = vst [vmem:[#allocation8 + $0x18] sm:$0xff] %v1153
    %1162 = vst [vmem:[#allocation8 + $0x20] sm:$0xff] %v1154
    %1163 = vst [vmem:[#allocation8 + $0x28] sm:$0xff] %v1155
    %1164 = vst [vmem:[#allocation8 + $0x30] sm:$0xff] %v1156
    %1165 = vst [vmem:[#allocation8 + $0x38] sm:$0xff] %v1157
    %vm1166 = vcmp.lt.s32.totalorder %v117, 0
    %v1167 = vsub.s32 0, %v117
    %v1168 = vsel %vm1166, %v1167, %v117
    %v1169 = vshrl.u32 %v1168, 2
    %v1170 = vand.u32 %v1168, 3
    %v1171 = vsub.s32 0, %v1170
    %v1172 = vsel %vm1166, %v1171, %v1170
    %vm1173 = vcmp.lt.s32.totalorder %v118, 0
    %v1174 = vsub.s32 0, %v118
    %v1175 = vsel %vm1173, %v1174, %v118
    %v1176 = vshrl.u32 %v1175, 2
    %v1177 = vand.u32 %v1175, 3
    %v1178 = vsub.s32 0, %v1177
    %v1179 = vsel %vm1173, %v1178, %v1177
    %vm1180 = vcmp.lt.s32.totalorder %v119, 0
    %v1181 = vsub.s32 0, %v119
    %v1182 = vsel %vm1180, %v1181, %v119
    %v1183 = vshrl.u32 %v1182, 2
    %v1184 = vand.u32 %v1182, 3
    %v1185 = vsub.s32 0, %v1184
    %v1186 = vsel %vm1180, %v1185, %v1184
    %vm1187 = vcmp.lt.s32.totalorder %v120, 0
    %v1188 = vsub.s32 0, %v120
    %v1189 = vsel %vm1187, %v1188, %v120
    %v1190 = vshrl.u32 %v1189, 2
    %v1191 = vand.u32 %v1189, 3
    %v1192 = vsub.s32 0, %v1191
    %v1193 = vsel %vm1187, %v1192, %v1191
    %vm1194 = vcmp.ne.s32.totalorder %v1172, 0
    %vm1195 = vcmp.ne.s32.totalorder %v1179, 0
    %vm1196 = vcmp.ne.s32.totalorder %v1186, 0
    %vm1197 = vcmp.ne.s32.totalorder %v1193, 0
    %vm1198 = vcmp.lt.s32.totalorder %v1172, 0
    %vm1199 = vcmp.lt.s32.totalorder %v1179, 0
    %vm1200 = vcmp.lt.s32.totalorder %v1186, 0
    %vm1201 = vcmp.lt.s32.totalorder %v1193, 0
    %vm1202 = vmand %vm1198, %vm1194
    %vm1203 = vmand %vm1199, %vm1195
    %vm1204 = vmand %vm1200, %vm1196
    %vm1205 = vmand %vm1201, %vm1197
    %v1206 = vadd.s32 %v1172, 4
    %v1207 = vadd.s32 %v1179, 4
    %v1208 = vadd.s32 %v1186, 4
    %v1209 = vadd.s32 %v1193, 4
    %v1210 = vsel %vm1202, %v1206, %v1172
    %v1211 = vsel %vm1203, %v1207, %v1179
    %v1212 = vsel %vm1204, %v1208, %v1186
    %v1213 = vsel %vm1205, %v1209, %v1193
    %vm1214 = vcmp.ge.s32.totalorder %v1210, 1
    %vm1215 = vcmp.ge.s32.totalorder %v1211, 1
    %vm1216 = vcmp.ge.s32.totalorder %v1212, 1
    %vm1217 = vcmp.ge.s32.totalorder %v1213, 1
    %vm1218 = vcmp.le.s32.totalorder %v1210, 2
    %vm1219 = vcmp.le.s32.totalorder %v1211, 2
    %vm1220 = vcmp.le.s32.totalorder %v1212, 2
    %vm1221 = vcmp.le.s32.totalorder %v1213, 2
    %v1222 = vld [vmem:[#allocation2 + $0xb] sm:$0xff]
    %v1223 = vld [vmem:[#allocation2 + $0x13] sm:$0xff]
    %v1224 = vld [vmem:[#allocation2 + $0x1b] sm:$0xff]
    %v1225 = vld [vmem:[#allocation2 + $0x23] sm:$0xff]
    %v1226 = vld [vmem:[#allocation2 + $0x4b] sm:$0xff]
    %v1227 = vld [vmem:[#allocation2 + $0x53] sm:$0xff]
    %v1228 = vld [vmem:[#allocation2 + $0x5b] sm:$0xff]
    %v1229 = vld [vmem:[#allocation2 + $0x63] sm:$0xff]
    %v1230 = vld [vmem:[#allocation2 + $0xc] sm:$0xff]
    %v1231 = vld [vmem:[#allocation2 + $0x14] sm:$0xff]
    %v1232 = vld [vmem:[#allocation2 + $0x1c] sm:$0xff]
    %v1233 = vld [vmem:[#allocation2 + $0x24] sm:$0xff]
    %v1234 = vld [vmem:[#allocation2 + $0x4c] sm:$0xff]
    %v1235 = vld [vmem:[#allocation2 + $0x54] sm:$0xff]
    %v1236 = vld [vmem:[#allocation2 + $0x5c] sm:$0xff]
    %v1237 = vld [vmem:[#allocation2 + $0x64] sm:$0xff]
    %v1238 = vld [vmem:[#allocation2 + $0xd] sm:$0xff]
    %v1239 = vld [vmem:[#allocation2 + $0x15] sm:$0xff]
    %v1240 = vld [vmem:[#allocation2 + $0x1d] sm:$0xff]
    %v1241 = vld [vmem:[#allocation2 + $0x25] sm:$0xff]
    %v1242 = vld [vmem:[#allocation2 + $0x4d] sm:$0xff]
    %v1243 = vld [vmem:[#allocation2 + $0x55] sm:$0xff]
    %v1244 = vld [vmem:[#allocation2 + $0x5d] sm:$0xff]
    %v1245 = vld [vmem:[#allocation2 + $0x65] sm:$0xff]
    %v1246 = vsel %vm1214, 1, 0
    %v1247 = vsel %vm1215, 1, 0
    %v1248 = vsel %vm1216, 1, 0
    %v1249 = vsel %vm1217, 1, 0
    %vm1250 = vcmp.eq.s32.totalorder %v1246, 1
    %vm1251 = vcmp.eq.s32.totalorder %v1247, 1
    %vm1252 = vcmp.eq.s32.totalorder %v1248, 1
    %vm1253 = vcmp.eq.s32.totalorder %v1249, 1
    %v1254 = vsel %vm1250, %v1222, 0.0
    %v1255 = vsel %vm1251, %v1223, 0.0
    %v1256 = vsel %vm1252, %v1224, 0.0
    %v1257 = vsel %vm1253, %v1225, 0.0
    %v1258 = vsel %vm1250, %v1226, 0.0
    %v1259 = vsel %vm1251, %v1227, 0.0
    %v1260 = vsel %vm1252, %v1228, 0.0
    %v1261 = vsel %vm1253, %v1229, 0.0
    %v1262 = vmul.f32 %v1254, %v305
    %v1263 = vmul.f32 %v1255, %v305
    %v1264 = vmul.f32 %v1256, %v305
    %v1265 = vmul.f32 %v1257, %v305
    %v1266 = vmul.f32 %v1258, %v305
    %v1267 = vmul.f32 %v1259, %v305
    %v1268 = vmul.f32 %v1260, %v305
    %v1269 = vmul.f32 %v1261, %v305
    %v1270 = vadd.f32 %v1262, 0.0
    %v1271 = vadd.f32 %v1263, 0.0
    %v1272 = vadd.f32 %v1264, 0.0
    %v1273 = vadd.f32 %v1265, 0.0
    %v1274 = vadd.f32 %v1266, 0.0
    %v1275 = vadd.f32 %v1267, 0.0
    %v1276 = vadd.f32 %v1268, 0.0
    %v1277 = vadd.f32 %v1269, 0.0
    %v1278 = vmul.f32 %v1230, %v322
    %v1279 = vmul.f32 %v1231, %v322
    %v1280 = vmul.f32 %v1232, %v322
    %v1281 = vmul.f32 %v1233, %v322
    %v1282 = vmul.f32 %v1234, %v322
    %v1283 = vmul.f32 %v1235, %v322
    %v1284 = vmul.f32 %v1236, %v322
    %v1285 = vmul.f32 %v1237, %v322
    %v1286 = vadd.f32 %v1270, %v1278
    %v1287 = vadd.f32 %v1271, %v1279
    %v1288 = vadd.f32 %v1272, %v1280
    %v1289 = vadd.f32 %v1273, %v1281
    %v1290 = vadd.f32 %v1274, %v1282
    %v1291 = vadd.f32 %v1275, %v1283
    %v1292 = vadd.f32 %v1276, %v1284
    %v1293 = vadd.f32 %v1277, %v1285
    %v1294 = vsel %vm1218, 1, 0
    %v1295 = vsel %vm1219, 1, 0
    %v1296 = vsel %vm1220, 1, 0
    %v1297 = vsel %vm1221, 1, 0
    %vm1298 = vcmp.eq.s32.totalorder %v1294, 1
    %vm1299 = vcmp.eq.s32.totalorder %v1295, 1
    %vm1300 = vcmp.eq.s32.totalorder %v1296, 1
    %vm1301 = vcmp.eq.s32.totalorder %v1297, 1
    %v1302 = vsel %vm1298, %v1238, 0.0
    %v1303 = vsel %vm1299, %v1239, 0.0
    %v1304 = vsel %vm1300, %v1240, 0.0
    %v1305 = vsel %vm1301, %v1241, 0.0
    %v1306 = vsel %vm1298, %v1242, 0.0
    %v1307 = vsel %vm1299, %v1243, 0.0
    %v1308 = vsel %vm1300, %v1244, 0.0
    %v1309 = vsel %vm1301, %v1245, 0.0
    %v1310 = vmul.f32 %v1302, %v355
    %v1311 = vmul.f32 %v1303, %v355
    %v1312 = vmul.f32 %v1304, %v355
    %v1313 = vmul.f32 %v1305, %v355
    %v1314 = vmul.f32 %v1306, %v355
    %v1315 = vmul.f32 %v1307, %v355
    %v1316 = vmul.f32 %v1308, %v355
    %v1317 = vmul.f32 %v1309, %v355
    %v1318 = vadd.f32 %v1286, %v1310
    %v1319 = vadd.f32 %v1287, %v1311
    %v1320 = vadd.f32 %v1288, %v1312
    %v1321 = vadd.f32 %v1289, %v1313
    %v1322 = vadd.f32 %v1290, %v1314
    %v1323 = vadd.f32 %v1291, %v1315
    %v1324 = vadd.f32 %v1292, %v1316
    %v1325 = vadd.f32 %v1293, %v1317
    %v1326 = vld [vmem:[#allocation2 + $0xf] sm:$0xff]
    %v1327 = vld [vmem:[#allocation2 + $0x17] sm:$0xff]
    %v1328 = vld [vmem:[#allocation2 + $0x1f] sm:$0xff]
    %v1329 = vld [vmem:[#allocation2 + $0x27] sm:$0xff]
    %v1330 = vld [vmem:[#allocation2 + $0x4f] sm:$0xff]
    %v1331 = vld [vmem:[#allocation2 + $0x57] sm:$0xff]
    %v1332 = vld [vmem:[#allocation2 + $0x5f] sm:$0xff]
    %v1333 = vld [vmem:[#allocation2 + $0x67] sm:$0xff]
    %v1334 = vld [vmem:[#allocation2 + $0x10] sm:$0xff]
    %v1335 = vld [vmem:[#allocation2 + $0x18] sm:$0xff]
    %v1336 = vld [vmem:[#allocation2 + $0x20] sm:$0xff]
    %v1337 = vld [vmem:[#allocation2 + $0x28] sm:$0xff]
    %v1338 = vld [vmem:[#allocation2 + $0x50] sm:$0xff]
    %v1339 = vld [vmem:[#allocation2 + $0x58] sm:$0xff]
    %v1340 = vld [vmem:[#allocation2 + $0x60] sm:$0xff]
    %v1341 = vld [vmem:[#allocation2 + $0x68] sm:$0xff]
    %v1342 = vld [vmem:[#allocation2 + $0x11] sm:$0xff]
    %v1343 = vld [vmem:[#allocation2 + $0x19] sm:$0xff]
    %v1344 = vld [vmem:[#allocation2 + $0x21] sm:$0xff]
    %v1345 = vld [vmem:[#allocation2 + $0x29] sm:$0xff]
    %v1346 = vld [vmem:[#allocation2 + $0x51] sm:$0xff]
    %v1347 = vld [vmem:[#allocation2 + $0x59] sm:$0xff]
    %v1348 = vld [vmem:[#allocation2 + $0x61] sm:$0xff]
    %v1349 = vld [vmem:[#allocation2 + $0x69] sm:$0xff]
    %v1350 = vsel %vm1250, %v1326, 0.0
    %v1351 = vsel %vm1251, %v1327, 0.0
    %v1352 = vsel %vm1252, %v1328, 0.0
    %v1353 = vsel %vm1253, %v1329, 0.0
    %v1354 = vsel %vm1250, %v1330, 0.0
    %v1355 = vsel %vm1251, %v1331, 0.0
    %v1356 = vsel %vm1252, %v1332, 0.0
    %v1357 = vsel %vm1253, %v1333, 0.0
    %v1358 = vmul.f32 %v1350, %v398
    %v1359 = vmul.f32 %v1351, %v398
    %v1360 = vmul.f32 %v1352, %v398
    %v1361 = vmul.f32 %v1353, %v398
    %v1362 = vmul.f32 %v1354, %v398
    %v1363 = vmul.f32 %v1355, %v398
    %v1364 = vmul.f32 %v1356, %v398
    %v1365 = vmul.f32 %v1357, %v398
    %v1366 = vadd.f32 %v1318, %v1358
    %v1367 = vadd.f32 %v1319, %v1359
    %v1368 = vadd.f32 %v1320, %v1360
    %v1369 = vadd.f32 %v1321, %v1361
    %v1370 = vadd.f32 %v1322, %v1362
    %v1371 = vadd.f32 %v1323, %v1363
    %v1372 = vadd.f32 %v1324, %v1364
    %v1373 = vadd.f32 %v1325, %v1365
    %v1374 = vmul.f32 %v1334, %v415
    %v1375 = vmul.f32 %v1335, %v415
    %v1376 = vmul.f32 %v1336, %v415
    %v1377 = vmul.f32 %v1337, %v415
    %v1378 = vmul.f32 %v1338, %v415
    %v1379 = vmul.f32 %v1339, %v415
    %v1380 = vmul.f32 %v1340, %v415
    %v1381 = vmul.f32 %v1341, %v415
    %v1382 = vadd.f32 %v1366, %v1374
    %v1383 = vadd.f32 %v1367, %v1375
    %v1384 = vadd.f32 %v1368, %v1376
    %v1385 = vadd.f32 %v1369, %v1377
    %v1386 = vadd.f32 %v1370, %v1378
    %v1387 = vadd.f32 %v1371, %v1379
    %v1388 = vadd.f32 %v1372, %v1380
    %v1389 = vadd.f32 %v1373, %v1381
    %v1390 = vsel %vm1298, %v1342, 0.0
    %v1391 = vsel %vm1299, %v1343, 0.0
    %v1392 = vsel %vm1300, %v1344, 0.0
    %v1393 = vsel %vm1301, %v1345, 0.0
    %v1394 = vsel %vm1298, %v1346, 0.0
    %v1395 = vsel %vm1299, %v1347, 0.0
    %v1396 = vsel %vm1300, %v1348, 0.0
    %v1397 = vsel %vm1301, %v1349, 0.0
    %v1398 = vmul.f32 %v1390, %v440
    %v1399 = vmul.f32 %v1391, %v440
    %v1400 = vmul.f32 %v1392, %v440
    %v1401 = vmul.f32 %v1393, %v440
    %v1402 = vmul.f32 %v1394, %v440
    %v1403 = vmul.f32 %v1395, %v440
    %v1404 = vmul.f32 %v1396, %v440
    %v1405 = vmul.f32 %v1397, %v440
    %v1406 = vadd.f32 %v1382, %v1398
    %v1407 = vadd.f32 %v1383, %v1399
    %v1408 = vadd.f32 %v1384, %v1400
    %v1409 = vadd.f32 %v1385, %v1401
    %v1410 = vadd.f32 %v1386, %v1402
    %v1411 = vadd.f32 %v1387, %v1403
    %v1412 = vadd.f32 %v1388, %v1404
    %v1413 = vadd.f32 %v1389, %v1405
    %v1414 = vld [vmem:[#allocation2 + $0x2b] sm:$0xff]
    %v1415 = vld [vmem:[#allocation2 + $0x6b] sm:$0xff]
    %v1416 = vld [vmem:[#allocation2 + $0x2c] sm:$0xff]
    %v1417 = vld [vmem:[#allocation2 + $0x6c] sm:$0xff]
    %v1418 = vld [vmem:[#allocation2 + $0x2d] sm:$0xff]
    %v1419 = vld [vmem:[#allocation2 + $0x6d] sm:$0xff]
    %v1420 = vsel %vm1250, %v1223, 0.0
    %v1421 = vsel %vm1251, %v1224, 0.0
    %v1422 = vsel %vm1252, %v1225, 0.0
    %v1423 = vsel %vm1253, %v1414, 0.0
    %v1424 = vsel %vm1250, %v1227, 0.0
    %v1425 = vsel %vm1251, %v1228, 0.0
    %v1426 = vsel %vm1252, %v1229, 0.0
    %v1427 = vsel %vm1253, %v1415, 0.0
    %v1428 = vmul.f32 %v1420, %v483
    %v1429 = vmul.f32 %v1421, %v483
    %v1430 = vmul.f32 %v1422, %v483
    %v1431 = vmul.f32 %v1423, %v483
    %v1432 = vmul.f32 %v1424, %v483
    %v1433 = vmul.f32 %v1425, %v483
    %v1434 = vmul.f32 %v1426, %v483
    %v1435 = vmul.f32 %v1427, %v483
    %v1436 = vadd.f32 %v1406, %v1428
    %v1437 = vadd.f32 %v1407, %v1429
    %v1438 = vadd.f32 %v1408, %v1430
    %v1439 = vadd.f32 %v1409, %v1431
    %v1440 = vadd.f32 %v1410, %v1432
    %v1441 = vadd.f32 %v1411, %v1433
    %v1442 = vadd.f32 %v1412, %v1434
    %v1443 = vadd.f32 %v1413, %v1435
    %v1444 = vmul.f32 %v1231, %v500
    %v1445 = vmul.f32 %v1232, %v500
    %v1446 = vmul.f32 %v1233, %v500
    %v1447 = vmul.f32 %v1416, %v500
    %v1448 = vmul.f32 %v1235, %v500
    %v1449 = vmul.f32 %v1236, %v500
    %v1450 = vmul.f32 %v1237, %v500
    %v1451 = vmul.f32 %v1417, %v500
    %v1452 = vadd.f32 %v1436, %v1444
    %v1453 = vadd.f32 %v1437, %v1445
    %v1454 = vadd.f32 %v1438, %v1446
    %v1455 = vadd.f32 %v1439, %v1447
    %v1456 = vadd.f32 %v1440, %v1448
    %v1457 = vadd.f32 %v1441, %v1449
    %v1458 = vadd.f32 %v1442, %v1450
    %v1459 = vadd.f32 %v1443, %v1451
    %v1460 = vsel %vm1298, %v1239, 0.0
    %v1461 = vsel %vm1299, %v1240, 0.0
    %v1462 = vsel %vm1300, %v1241, 0.0
    %v1463 = vsel %vm1301, %v1418, 0.0
    %v1464 = vsel %vm1298, %v1243, 0.0
    %v1465 = vsel %vm1299, %v1244, 0.0
    %v1466 = vsel %vm1300, %v1245, 0.0
    %v1467 = vsel %vm1301, %v1419, 0.0
    %v1468 = vmul.f32 %v1460, %v525
    %v1469 = vmul.f32 %v1461, %v525
    %v1470 = vmul.f32 %v1462, %v525
    %v1471 = vmul.f32 %v1463, %v525
    %v1472 = vmul.f32 %v1464, %v525
    %v1473 = vmul.f32 %v1465, %v525
    %v1474 = vmul.f32 %v1466, %v525
    %v1475 = vmul.f32 %v1467, %v525
    %v1476 = vadd.f32 %v1452, %v1468
    %v1477 = vadd.f32 %v1453, %v1469
    %v1478 = vadd.f32 %v1454, %v1470
    %v1479 = vadd.f32 %v1455, %v1471
    %v1480 = vadd.f32 %v1456, %v1472
    %v1481 = vadd.f32 %v1457, %v1473
    %v1482 = vadd.f32 %v1458, %v1474
    %v1483 = vadd.f32 %v1459, %v1475
    %v1484 = vadd.f32 %v1476, %v543
    %v1485 = vadd.f32 %v1477, %v543
    %v1486 = vadd.f32 %v1478, %v543
    %v1487 = vadd.f32 %v1479, %v543
    %v1488 = vadd.f32 %v1480, %v543
    %v1489 = vadd.f32 %v1481, %v543
    %v1490 = vadd.f32 %v1482, %v543
    %v1491 = vadd.f32 %v1483, %v543
    %v1492 = vmax.f32 %v1484, 0.0
    %v1493 = vmax.f32 %v1485, 0.0
    %v1494 = vmax.f32 %v1486, 0.0
    %v1495 = vmax.f32 %v1487, 0.0
    %v1496 = vmax.f32 %v1488, 0.0
    %v1497 = vmax.f32 %v1489, 0.0
    %v1498 = vmax.f32 %v1490, 0.0
    %v1499 = vmax.f32 %v1491, 0.0
    %v1500 = vpack.c.bf16 %v1493, %v1492
    %v1501 = vpack.c.bf16 %v1495, %v1494
    %v1502 = vpack.c.bf16 %v1497, %v1496
    %v1503 = vpack.c.bf16 %v1499, %v1498
    %1504 = vmatpush.bf16.msra.mxu0 %v607
    %1505 = vmatpush.bf16.msra.mxu0 %v606
    %1506 = vmatpush.bf16.msra.mxu0 %v605
    %1507 = vmatpush.bf16.msra.mxu0 %v604
    %1508 = vmatpush.bf16.msra.mxu0 %v603
    %1509 = vmatpush.bf16.msra.mxu0 %v602
    %1510 = vmatpush.bf16.msra.mxu0 %v601
    %1511 = vmatpush.bf16.msra.mxu0 %v600
    %1512 = vmatmul.bf16.gmra.mxu0 %v1500
    %v1513 = vpop.f32.mrf.mxu0
    %v1514 = vadd.f32 %v566, %v1513
    %v1515 = vpop.f32.mrf.mxu0
    %v1516 = vadd.f32 %v566, %v1515
    %1517 = vmatmul.bf16.gmra.mxu0 %v1501
    %v1518 = vpop.f32.mrf.mxu0
    %v1519 = vadd.f32 %v566, %v1518
    %v1520 = vpop.f32.mrf.mxu0
    %v1521 = vadd.f32 %v566, %v1520
    %1522 = vmatmul.bf16.gmra.mxu0 %v1502
    %v1523 = vpop.f32.mrf.mxu0
    %v1524 = vadd.f32 %v566, %v1523
    %v1525 = vpop.f32.mrf.mxu0
    %v1526 = vadd.f32 %v566, %v1525
    %1527 = vmatmul.bf16.gmra.mxu0 %v1503
    %v1528 = vpop.f32.mrf.mxu0
    %v1529 = vadd.f32 %v566, %v1528
    %v1530 = vpop.f32.mrf.mxu0
    %v1531 = vadd.f32 %v566, %v1530
    %1532 = vdwg.mxu0
    %v1533 = vmax.f32 %v1514, 0.0
    %v1534 = vmax.f32 %v1516, 0.0
    %v1535 = vmax.f32 %v1519, 0.0
    %v1536 = vmax.f32 %v1521, 0.0
    %v1537 = vmax.f32 %v1524, 0.0
    %v1538 = vmax.f32 %v1526, 0.0
    %v1539 = vmax.f32 %v1529, 0.0
    %v1540 = vmax.f32 %v1531, 0.0
    %v1541 = vld [vmem:[#allocation8] sm:$0xff]
    %v1542 = vld [vmem:[#allocation8 + $0x8] sm:$0xff]
    %v1543 = vld [vmem:[#allocation8 + $0x10] sm:$0xff]
    %v1544 = vld [vmem:[#allocation8 + $0x18] sm:$0xff]
    %v1545 = vld [vmem:[#allocation8 + $0x20] sm:$0xff]
    %v1546 = vld [vmem:[#allocation8 + $0x28] sm:$0xff]
    %v1547 = vld [vmem:[#allocation8 + $0x30] sm:$0xff]
    %v1548 = vld [vmem:[#allocation8 + $0x38] sm:$0xff]
    %1549 = vset.pattern.permute.xlu0 2
    %1550 = vperm.xlu0 %1549, %v108
    %v1551 = vpop.permute.xlu0 %1550
    %1553 = vset.pattern.permute.xlu0 2
    %1554 = vperm.xlu0 %1553, %v109
    %v1555 = vpop.permute.xlu0 %1554
    %1557 = vset.pattern.permute.xlu0 2
    %1558 = vperm.xlu0 %1557, %v110
    %v1559 = vpop.permute.xlu0 %1558
    %1561 = vset.pattern.permute.xlu0 2
    %1562 = vperm.xlu0 %1561, %v111
    %v1563 = vpop.permute.xlu0 %1562
    %1565 = vset.pattern.permute.xlu0 2
    %1566 = vperm.xlu0 %1565, %v112
    %v1567 = vpop.permute.xlu0 %1566
    %1569 = vset.pattern.permute.xlu0 2
    %1570 = vperm.xlu0 %1569, %v113
    %v1571 = vpop.permute.xlu0 %1570
    %1573 = vset.pattern.permute.xlu0 2
    %1574 = vperm.xlu0 %1573, %v114
    %v1575 = vpop.permute.xlu0 %1574
    %1577 = vset.pattern.permute.xlu0 2
    %1578 = vperm.xlu0 %1577, %v115
    %v1579 = vpop.permute.xlu0 %1578
    %v1581 = vmul.f32 %v1551, %v1533
    %v1582 = vmul.f32 %v1555, %v1534
    %v1583 = vmul.f32 %v1559, %v1535
    %v1584 = vmul.f32 %v1563, %v1536
    %v1585 = vmul.f32 %v1567, %v1537
    %v1586 = vmul.f32 %v1571, %v1538
    %v1587 = vmul.f32 %v1575, %v1539
    %v1588 = vmul.f32 %v1579, %v1540
    %v1589 = vadd.f32 %v1541, %v1581
    %v1590 = vadd.f32 %v1542, %v1582
    %v1591 = vadd.f32 %v1543, %v1583
    %v1592 = vadd.f32 %v1544, %v1584
    %v1593 = vadd.f32 %v1545, %v1585
    %v1594 = vadd.f32 %v1546, %v1586
    %v1595 = vadd.f32 %v1547, %v1587
    %v1596 = vadd.f32 %v1548, %v1588
    %1597 = vst [vmem:[#allocation8] sm:$0xff] %v1589
    %1598 = vst [vmem:[#allocation8 + $0x8] sm:$0xff] %v1590
    %1599 = vst [vmem:[#allocation8 + $0x10] sm:$0xff] %v1591
    %1600 = vst [vmem:[#allocation8 + $0x18] sm:$0xff] %v1592
    %1601 = vst [vmem:[#allocation8 + $0x20] sm:$0xff] %v1593
    %1602 = vst [vmem:[#allocation8 + $0x28] sm:$0xff] %v1594
    %1603 = vst [vmem:[#allocation8 + $0x30] sm:$0xff] %v1595
    %1604 = vst [vmem:[#allocation8 + $0x38] sm:$0xff] %v1596
    // Predicated region
    $region34: #{tpu_custom_call.1} parent=1 // pred_check
      _
    $region35: #{tpu_custom_call.1} parent=1 // pred_check_branch
      %1606 = sbr.rel (0) target = $region37
    $region36: #{tpu_custom_call.1} parent=1 // pred_region
      %1608 = vsyncadd [#allocation5], 0
      %s1609 = sshll.u32 [#allocation8], 4
      %s1610 = int_to_ptr.vmem [resolvable:$true] %s1609
      %s1611 = sshll.u32 %s6, 4
      %s1612 = int_to_ptr.hbm [resolvable:$true] %s1611
      %1617 = dma.vmem_to_hbm [thread:$0]  %s1610, 1024, %s1612, [#allocation5], 128, 128, 8
    $region37: #{tpu_custom_call.1} parent=1 // pred_fallthru
      _
    // Predicated region
    $region38: #{tpu_custom_call.1} parent=1 // pred_check
      _
    $region39: #{tpu_custom_call.1} parent=1 // pred_check_branch
      %1619 = sbr.rel (0) target = $region41
    $region40: #{tpu_custom_call.1} parent=1 // pred_region
      %1621 = dma.done [#allocation5], 1024
    $region41: #{tpu_custom_call.1} parent=1 // pred_fallthru
      _
    %1622 = vsyncpa [#allocation4], 1
    %1623 = vsyncpa [#allocation7], 1
    %1624 = vsyncpa [#allocation5], 1

</llo_original>
